<compile_context>
chip_gen: v5e
topology: v5e:2x2
jax: 0.10.0
libtpu: 0.0.40
codegen_flags: <defaults>
</compile_context>

<pallas_src>
import functools
import math

import jax
import jax.numpy as jnp
from jax.experimental import pallas as pl
from jax.experimental.pallas import tpu as pltpu

LANE = 128


def _mdn_loss_kernel(pi_ref, mu_ref, cov_ref, y_ref, out_ref, *, D, G):
    # pi_ref : (G,        TR, 128)
    # mu_ref : (G*D,      TR, 128)   flattened as g*D + i
    # cov_ref: (G*Dtri,   TR, 128)   packed lower triangle, g*Dtri + tri(i, j)
    # y_ref  : (D,        TR, 128)
    # out_ref: (TR, 128)             per-row logsumexp_g(logit_g + log N_g(y))
    f32 = jnp.float32
    const = -0.5 * D * math.log(2.0 * math.pi)
    TINY = 1e-20  # pivot floor: no-op for valid PSD cov, keeps zero-padded rows finite
    Dtri = D * (D + 1) // 2

    def tri(i, j):  # packed lower-triangle index, j <= i
        return i * (i + 1) // 2 + j

    # Hoisted once: y rows (reused by every mixture component).
    yv = [y_ref[i].astype(f32) for i in range(D)]

    # Categorical(probs=pi).logits normalizer: log(sum_g pi_g).
    pi_sum = pi_ref[0].astype(f32)
    for g in range(1, G):
        pi_sum = pi_sum + pi_ref[g].astype(f32)
    log_pi_sum = jnp.log(pi_sum)

    # Streaming logsumexp over the G components (no comb[G] list stays live).
    m = None
    acc = None
    for g in range(G):
        # Residual of the forward substitution L z = (y - mu_g); starts as diff.
        r = [yv[i] - mu_ref[g * D + i].astype(f32) for i in range(D)]

        # Lower triangle of Sigma_g, updated in place (right-looking Cholesky).
        a = {}
        for i in range(D):
            for j in range(i + 1):
                a[(i, j)] = cov_ref[g * Dtri + tri(i, j)].astype(f32)

        maha = None
        diag_prod = None
        for j in range(D):
            s = jnp.maximum(a[(j, j)], TINY)      # Schur-complement pivot
            inv = jax.lax.rsqrt(s)                # 1/L[j,j]: one EUP op (no sqrt+div)
            ljj = s * inv                         # L[j,j] = sqrt(s)
            diag_prod = ljj if diag_prod is None else diag_prod * ljj
            zj = r[j] * inv                       # interleaved forward substitution
            maha = zj * zj if maha is None else maha + zj * zj
            if j + 1 < D:
                lcol = [a[(i, j)] * inv for i in range(j + 1, D)]   # L[i,j], i > j
                for ii, i in enumerate(range(j + 1, D)):
                    r[i] = r[i] - lcol[ii] * zj
                    for kk, k in enumerate(range(j + 1, i + 1)):
                        a[(i, k)] = a[(i, k)] - lcol[ii] * lcol[kk]
                # column j of L is dead here -> small live set even at TR = 128

        # log N_g(y) + categorical logit; single log for the determinant.
        comb = (jnp.log(pi_ref[g].astype(f32)) - log_pi_sum
                + const - 0.5 * maha - jnp.log(diag_prod))
        if m is None:
            m, acc = comb, jnp.ones_like(comb)
        else:
            m_new = jnp.maximum(m, comb)
            acc = acc * jnp.exp(m - m_new) + jnp.exp(comb - m_new)
            m = m_new

    out_ref[...] = m + jnp.log(acc)


def mdn_loss(pi, mu, full_cov, y, *, target_rows_per_tile=16384,
             vmem_budget_bytes=24 * 1024 * 1024, param_dtype=None):
    """Pallas equivalent of MDNLoss.forward(pi, mu, full_cov, y)."""
    B, S, G, D = mu.shape
    M = B * S
    Dtri = D * (D + 1) // 2

    feat_dtype = jnp.dtype(param_dtype) if param_dtype is not None else jnp.dtype(
        jnp.promote_types(mu.dtype, jnp.float32))
    pi_dtype = jnp.dtype(pi.dtype)

    # ---- VMEM-budget / overhead-amortizing tile size (rows per grid step).
    in_bytes_per_row = (pi_dtype.itemsize * G
                        + feat_dtype.itemsize * (G * D + G * Dtri + D))
    bytes_per_row = in_bytes_per_row + 4              # + f32 lse writeback
    R_needed = pl.cdiv(M, LANE)                       # 128-row groups needed
    sub_cap = max(vmem_budget_bytes // (2 * LANE * bytes_per_row), 8)  # 2x double-buffer
    TR_max = min(max(target_rows_per_tile // LANE, 8), sub_cap)
    TR_max = max((TR_max // 8) * 8, 8)

    if R_needed < 16 and R_needed <= TR_max:
        TR, num_tiles = R_needed, 1                   # small input: one full-extent tile
    else:
        # >= 2 grid steps for large inputs so both v7x TensorCores get work.
        num_tiles = max(pl.cdiv(R_needed, TR_max), 2)
        TR = max(((pl.cdiv(R_needed, num_tiles) + 7) // 8) * 8, 8)
        num_tiles = pl.cdiv(R_needed, TR)
    R = num_tiles * TR
    pad_rows = R * LANE - M

    # ---- Relayout: rows on (sublane, lane), tiny feature axes leading.
    #      Pad + cast + transpose are expressed so XLA fuses them into one copy;
    #      padded rows are zero (their lse is garbage and sliced away below).
    def to_feature_major(x2, dtype):                  # (M, F) -> (F, R, 128)
        if x2.dtype != dtype:
            x2 = x2.astype(dtype)
        if pad_rows:
            x2 = jnp.pad(x2, ((0, pad_rows), (0, 0)))
        return x2.reshape(R, LANE, x2.shape[1]).transpose(2, 0, 1)

    pi_t = to_feature_major(pi.reshape(M, G), pi_dtype)
    mu_t = to_feature_major(mu.reshape(M, G * D), feat_dtype)
    y_t = to_feature_major(y.reshape(M, D), feat_dtype)

    # Covariance: ship only the lower triangle; tril-select + pad + relayout as one
    # stacked-slice copy (the 6/16 never-read elements per Gaussian never move).
    cov5 = full_cov.reshape(M, G, D, D)
    if cov5.dtype != feat_dtype:
        cov5 = cov5.astype(feat_dtype)
    if pad_rows:
        cov5 = jnp.pad(cov5, ((0, pad_rows), (0, 0), (0, 0), (0, 0)))
    cov5 = cov5.reshape(R, LANE, G, D, D)
    tril_ij = [(i, j) for i in range(D) for j in range(i + 1)]
    cov_t = jnp.concatenate(
        [cov5[:, :, g, i, j][None] for g in range(G) for (i, j) in tril_ij],
        axis=0)                                       # (G*Dtri, R, 128)

    kernel = functools.partial(_mdn_loss_kernel, D=D, G=G)

    flops_per_row = G * (2 * D * D * D // 3 + 5 * D * D + 10 * D + 12)
    cost = pl.CostEstimate(
        flops=int(R * LANE * flops_per_row),
        transcendentals=int(R * LANE * (G * (D + 4) + 2)),
        bytes_accessed=int(R * LANE * bytes_per_row),
    )

    row_map = lambda i: (0, i, 0)
    lse = pl.pallas_call(
        kernel,
        out_shape=jax.ShapeDtypeStruct((R, LANE), jnp.float32),
        grid_spec=pltpu.PrefetchScalarGridSpec(
            num_scalar_prefetch=0,
            grid=(num_tiles,),
            in_specs=[
                pl.BlockSpec((G, TR, LANE), row_map),
                pl.BlockSpec((G * D, TR, LANE), row_map),
                pl.BlockSpec((G * Dtri, TR, LANE), row_map),
                pl.BlockSpec((D, TR, LANE), row_map),
            ],
            out_specs=pl.BlockSpec((TR, LANE), lambda i: (i, 0)),
        ),
        compiler_params=pltpu.CompilerParams(
            dimension_semantics=("parallel",),   # independent tiles -> megacore/v7x split
            vmem_limit_bytes=32 * 1024 * 1024,
        ),
        cost_estimate=cost,
    )(pi_t, mu_t, cov_t, y_t)

    # Final reduction + mean in JAX; padded rows sliced away before the sum.
    lse_rows = lse.reshape(-1)[:M]
    return -jnp.sum(lse_rows) / M


def mdn_loss_ref(pi, mu, full_cov, y):
    """Pure-JAX reference mirroring the PyTorch module."""
    B, S, G, D = mu.shape
    yb = jnp.broadcast_to(y[:, :, None, :], mu.shape).astype(jnp.float32)
    mu = mu.astype(jnp.float32)
    cov = full_cov.astype(jnp.float32)
    diff = yb - mu
    chol = jnp.linalg.cholesky(cov)
    z = jax.scipy.linalg.solve_triangular(chol, diff[..., None], lower=True)[..., 0]
    maha = jnp.sum(z * z, axis=-1)
    half_logdet = jnp.sum(jnp.log(jnp.diagonal(chol, axis1=-2, axis2=-1)), axis=-1)
    log_probs = -0.5 * maha - half_logdet - 0.5 * D * jnp.log(2.0 * jnp.pi)
    logits = jnp.log(pi) - jnp.log(jnp.sum(pi, axis=-1, keepdims=True))
    lse = jax.scipy.special.logsumexp(logits + log_probs, axis=2)
    return -jnp.mean(lse)


def _make_inputs(key, B, S, G, D):
    k1, k2, k3, k4 = jax.random.split(key, 4)
    pi = jax.nn.softmax(jax.random.normal(k1, (B, S, G)), axis=-1)
    mu = jax.random.normal(k2, (B, S, G, D))
    A = jax.random.normal(k3, (B, S, G, D, D)) * 0.3
    full_cov = jnp.einsum("bsgij,bsgkj->bsgik", A, A) + 0.5 * jnp.eye(D)  # PSD
    y = jax.random.normal(k4, (B, S, D))
    return pi, mu, full_cov, y


if __name__ == "__main__":
    key = jax.random.PRNGKey(0)

    # Small shape consistent with the module: batch=2, seq=8, gaussians=5, action_dim=4.
    pi, mu, full_cov, y = _make_inputs(key, 2, 8, 5, 4)
    loss = mdn_loss(pi, mu, full_cov, y)
    jax.block_until_ready(loss)
    ref = mdn_loss_ref(pi, mu, full_cov, y)
    assert jnp.allclose(loss, ref, rtol=1e-4, atol=1e-4), (loss, ref)

    # Larger ragged shape: exercises the multi-tile (>=2 step) grid and row padding.
    pi2, mu2, cov2, y2 = _make_inputs(jax.random.PRNGKey(1), 4, 600, 5, 4)
    loss2 = mdn_loss(pi2, mu2, cov2, y2)
    jax.block_until_ready(loss2)
    ref2 = mdn_loss_ref(pi2, mu2, cov2, y2)
    assert jnp.allclose(loss2, ref2, rtol=1e-4, atol=1e-4), (loss2, ref2)

    print("KERNEL_OK")
</pallas_src>

<mosaic_0001>
module attributes {stable_mosaic.version = 11 : i64} {
  func.func @_mdn_loss_kernel(%arg0: i32, %arg1: memref<5x1x128xf32, #tpu.memory_space<vmem>>, %arg2: memref<20x1x128xf32, #tpu.memory_space<vmem>>, %arg3: memref<50x1x128xf32, #tpu.memory_space<vmem>>, %arg4: memref<4x1x128xf32, #tpu.memory_space<vmem>>, %arg5: memref<1x128xf32, #tpu.memory_space<vmem>>) attributes {dimension_semantics = [#tpu.dimension_semantics<parallel>], iteration_bounds = array<i64: 1>, scalar_prefetch = 0 : i64, scratch_operands = 0 : i64, tpu.core_type = #tpu.core_type<tc>, window_params = [{transform_indices = @transform_0, window_bounds = array<i64: 5, 1, 128>}, {transform_indices = @transform_1, window_bounds = array<i64: 20, 1, 128>}, {transform_indices = @transform_2, window_bounds = array<i64: 50, 1, 128>}, {transform_indices = @transform_3, window_bounds = array<i64: 4, 1, 128>}, {transform_indices = @transform_4, window_bounds = array<i64: 1, 128>}]} {
    %c0 = arith.constant 0 : index
    %c0_0 = arith.constant 0 : index
    %c0_1 = arith.constant 0 : index
    %0 = vector.load %arg4[%c0, %c0_0, %c0_1] : memref<4x1x128xf32, #tpu.memory_space<vmem>>, vector<1x1x128xf32>
    %1 = vector.shape_cast %0 : vector<1x1x128xf32> to vector<1x128xf32>
    %c1 = arith.constant 1 : index
    %c0_2 = arith.constant 0 : index
    %c0_3 = arith.constant 0 : index
    %2 = vector.load %arg4[%c1, %c0_2, %c0_3] : memref<4x1x128xf32, #tpu.memory_space<vmem>>, vector<1x1x128xf32>
    %3 = vector.shape_cast %2 : vector<1x1x128xf32> to vector<1x128xf32>
    %c2 = arith.constant 2 : index
    %c0_4 = arith.constant 0 : index
    %c0_5 = arith.constant 0 : index
    %4 = vector.load %arg4[%c2, %c0_4, %c0_5] : memref<4x1x128xf32, #tpu.memory_space<vmem>>, vector<1x1x128xf32>
    %5 = vector.shape_cast %4 : vector<1x1x128xf32> to vector<1x128xf32>
    %c3 = arith.constant 3 : index
    %c0_6 = arith.constant 0 : index
    %c0_7 = arith.constant 0 : index
    %6 = vector.load %arg4[%c3, %c0_6, %c0_7] : memref<4x1x128xf32, #tpu.memory_space<vmem>>, vector<1x1x128xf32>
    %7 = vector.shape_cast %6 : vector<1x1x128xf32> to vector<1x128xf32>
    %c0_8 = arith.constant 0 : index
    %c0_9 = arith.constant 0 : index
    %c0_10 = arith.constant 0 : index
    %8 = vector.load %arg1[%c0_8, %c0_9, %c0_10] : memref<5x1x128xf32, #tpu.memory_space<vmem>>, vector<1x1x128xf32>
    %9 = vector.shape_cast %8 : vector<1x1x128xf32> to vector<1x128xf32>
    %c1_11 = arith.constant 1 : index
    %c0_12 = arith.constant 0 : index
    %c0_13 = arith.constant 0 : index
    %10 = vector.load %arg1[%c1_11, %c0_12, %c0_13] : memref<5x1x128xf32, #tpu.memory_space<vmem>>, vector<1x1x128xf32>
    %11 = vector.shape_cast %10 : vector<1x1x128xf32> to vector<1x128xf32>
    %12 = arith.addf %9, %11 : vector<1x128xf32>
    %c2_14 = arith.constant 2 : index
    %c0_15 = arith.constant 0 : index
    %c0_16 = arith.constant 0 : index
    %13 = vector.load %arg1[%c2_14, %c0_15, %c0_16] : memref<5x1x128xf32, #tpu.memory_space<vmem>>, vector<1x1x128xf32>
    %14 = vector.shape_cast %13 : vector<1x1x128xf32> to vector<1x128xf32>
    %15 = arith.addf %12, %14 : vector<1x128xf32>
    %c3_17 = arith.constant 3 : index
    %c0_18 = arith.constant 0 : index
    %c0_19 = arith.constant 0 : index
    %16 = vector.load %arg1[%c3_17, %c0_18, %c0_19] : memref<5x1x128xf32, #tpu.memory_space<vmem>>, vector<1x1x128xf32>
    %17 = vector.shape_cast %16 : vector<1x1x128xf32> to vector<1x128xf32>
    %18 = arith.addf %15, %17 : vector<1x128xf32>
    %c4 = arith.constant 4 : index
    %c0_20 = arith.constant 0 : index
    %c0_21 = arith.constant 0 : index
    %19 = vector.load %arg1[%c4, %c0_20, %c0_21] : memref<5x1x128xf32, #tpu.memory_space<vmem>>, vector<1x1x128xf32>
    %20 = vector.shape_cast %19 : vector<1x1x128xf32> to vector<1x128xf32>
    %21 = arith.addf %18, %20 : vector<1x128xf32>
    %22 = math.log %21 : vector<1x128xf32>
    %c0_22 = arith.constant 0 : index
    %c0_23 = arith.constant 0 : index
    %c0_24 = arith.constant 0 : index
    %23 = vector.load %arg2[%c0_22, %c0_23, %c0_24] : memref<20x1x128xf32, #tpu.memory_space<vmem>>, vector<1x1x128xf32>
    %24 = vector.shape_cast %23 : vector<1x1x128xf32> to vector<1x128xf32>
    %25 = arith.subf %1, %24 : vector<1x128xf32>
    %c1_25 = arith.constant 1 : index
    %c0_26 = arith.constant 0 : index
    %c0_27 = arith.constant 0 : index
    %26 = vector.load %arg2[%c1_25, %c0_26, %c0_27] : memref<20x1x128xf32, #tpu.memory_space<vmem>>, vector<1x1x128xf32>
    %27 = vector.shape_cast %26 : vector<1x1x128xf32> to vector<1x128xf32>
    %28 = arith.subf %3, %27 : vector<1x128xf32>
    %c2_28 = arith.constant 2 : index
    %c0_29 = arith.constant 0 : index
    %c0_30 = arith.constant 0 : index
    %29 = vector.load %arg2[%c2_28, %c0_29, %c0_30] : memref<20x1x128xf32, #tpu.memory_space<vmem>>, vector<1x1x128xf32>
    %30 = vector.shape_cast %29 : vector<1x1x128xf32> to vector<1x128xf32>
    %31 = arith.subf %5, %30 : vector<1x128xf32>
    %c3_31 = arith.constant 3 : index
    %c0_32 = arith.constant 0 : index
    %c0_33 = arith.constant 0 : index
    %32 = vector.load %arg2[%c3_31, %c0_32, %c0_33] : memref<20x1x128xf32, #tpu.memory_space<vmem>>, vector<1x1x128xf32>
    %33 = vector.shape_cast %32 : vector<1x1x128xf32> to vector<1x128xf32>
    %34 = arith.subf %7, %33 : vector<1x128xf32>
    %c0_34 = arith.constant 0 : index
    %c0_35 = arith.constant 0 : index
    %c0_36 = arith.constant 0 : index
    %35 = vector.load %arg3[%c0_34, %c0_35, %c0_36] : memref<50x1x128xf32, #tpu.memory_space<vmem>>, vector<1x1x128xf32>
    %36 = vector.shape_cast %35 : vector<1x1x128xf32> to vector<1x128xf32>
    %c1_37 = arith.constant 1 : index
    %c0_38 = arith.constant 0 : index
    %c0_39 = arith.constant 0 : index
    %37 = vector.load %arg3[%c1_37, %c0_38, %c0_39] : memref<50x1x128xf32, #tpu.memory_space<vmem>>, vector<1x1x128xf32>
    %38 = vector.shape_cast %37 : vector<1x1x128xf32> to vector<1x128xf32>
    %c2_40 = arith.constant 2 : index
    %c0_41 = arith.constant 0 : index
    %c0_42 = arith.constant 0 : index
    %39 = vector.load %arg3[%c2_40, %c0_41, %c0_42] : memref<50x1x128xf32, #tpu.memory_space<vmem>>, vector<1x1x128xf32>
    %40 = vector.shape_cast %39 : vector<1x1x128xf32> to vector<1x128xf32>
    %c3_43 = arith.constant 3 : index
    %c0_44 = arith.constant 0 : index
    %c0_45 = arith.constant 0 : index
    %41 = vector.load %arg3[%c3_43, %c0_44, %c0_45] : memref<50x1x128xf32, #tpu.memory_space<vmem>>, vector<1x1x128xf32>
    %42 = vector.shape_cast %41 : vector<1x1x128xf32> to vector<1x128xf32>
    %c4_46 = arith.constant 4 : index
    %c0_47 = arith.constant 0 : index
    %c0_48 = arith.constant 0 : index
    %43 = vector.load %arg3[%c4_46, %c0_47, %c0_48] : memref<50x1x128xf32, #tpu.memory_space<vmem>>, vector<1x1x128xf32>
    %44 = vector.shape_cast %43 : vector<1x1x128xf32> to vector<1x128xf32>
    %c5 = arith.constant 5 : index
    %c0_49 = arith.constant 0 : index
    %c0_50 = arith.constant 0 : index
    %45 = vector.load %arg3[%c5, %c0_49, %c0_50] : memref<50x1x128xf32, #tpu.memory_space<vmem>>, vector<1x1x128xf32>
    %46 = vector.shape_cast %45 : vector<1x1x128xf32> to vector<1x128xf32>
    %c6 = arith.constant 6 : index
    %c0_51 = arith.constant 0 : index
    %c0_52 = arith.constant 0 : index
    %47 = vector.load %arg3[%c6, %c0_51, %c0_52] : memref<50x1x128xf32, #tpu.memory_space<vmem>>, vector<1x1x128xf32>
    %48 = vector.shape_cast %47 : vector<1x1x128xf32> to vector<1x128xf32>
    %c7 = arith.constant 7 : index
    %c0_53 = arith.constant 0 : index
    %c0_54 = arith.constant 0 : index
    %49 = vector.load %arg3[%c7, %c0_53, %c0_54] : memref<50x1x128xf32, #tpu.memory_space<vmem>>, vector<1x1x128xf32>
    %50 = vector.shape_cast %49 : vector<1x1x128xf32> to vector<1x128xf32>
    %c8 = arith.constant 8 : index
    %c0_55 = arith.constant 0 : index
    %c0_56 = arith.constant 0 : index
    %51 = vector.load %arg3[%c8, %c0_55, %c0_56] : memref<50x1x128xf32, #tpu.memory_space<vmem>>, vector<1x1x128xf32>
    %52 = vector.shape_cast %51 : vector<1x1x128xf32> to vector<1x128xf32>
    %c9 = arith.constant 9 : index
    %c0_57 = arith.constant 0 : index
    %c0_58 = arith.constant 0 : index
    %53 = vector.load %arg3[%c9, %c0_57, %c0_58] : memref<50x1x128xf32, #tpu.memory_space<vmem>>, vector<1x1x128xf32>
    %54 = vector.shape_cast %53 : vector<1x1x128xf32> to vector<1x128xf32>
    %cst = arith.constant 9.99999968E-21 : f32
    %55 = vector.broadcast %cst : f32 to vector<1x128xf32>
    %56 = arith.maximumf %36, %55 : vector<1x128xf32>
    %57 = math.rsqrt %56 : vector<1x128xf32>
    %58 = arith.mulf %56, %57 : vector<1x128xf32>
    %59 = arith.mulf %25, %57 : vector<1x128xf32>
    %60 = arith.mulf %59, %59 : vector<1x128xf32>
    %61 = arith.mulf %38, %57 : vector<1x128xf32>
    %62 = arith.mulf %42, %57 : vector<1x128xf32>
    %63 = arith.mulf %48, %57 : vector<1x128xf32>
    %64 = arith.mulf %61, %59 : vector<1x128xf32>
    %65 = arith.subf %28, %64 : vector<1x128xf32>
    %66 = arith.mulf %61, %61 : vector<1x128xf32>
    %67 = arith.subf %40, %66 : vector<1x128xf32>
    %68 = arith.mulf %62, %59 : vector<1x128xf32>
    %69 = arith.subf %31, %68 : vector<1x128xf32>
    %70 = arith.mulf %62, %61 : vector<1x128xf32>
    %71 = arith.subf %44, %70 : vector<1x128xf32>
    %72 = arith.mulf %62, %62 : vector<1x128xf32>
    %73 = arith.subf %46, %72 : vector<1x128xf32>
    %74 = arith.mulf %63, %59 : vector<1x128xf32>
    %75 = arith.subf %34, %74 : vector<1x128xf32>
    %76 = arith.mulf %63, %61 : vector<1x128xf32>
    %77 = arith.subf %50, %76 : vector<1x128xf32>
    %78 = arith.mulf %63, %62 : vector<1x128xf32>
    %79 = arith.subf %52, %78 : vector<1x128xf32>
    %80 = arith.mulf %63, %63 : vector<1x128xf32>
    %81 = arith.subf %54, %80 : vector<1x128xf32>
    %cst_59 = arith.constant 9.99999968E-21 : f32
    %82 = vector.broadcast %cst_59 : f32 to vector<1x128xf32>
    %83 = arith.maximumf %67, %82 : vector<1x128xf32>
    %84 = math.rsqrt %83 : vector<1x128xf32>
    %85 = arith.mulf %83, %84 : vector<1x128xf32>
    %86 = arith.mulf %58, %85 : vector<1x128xf32>
    %87 = arith.mulf %65, %84 : vector<1x128xf32>
    %88 = arith.mulf %87, %87 : vector<1x128xf32>
    %89 = arith.addf %60, %88 : vector<1x128xf32>
    %90 = arith.mulf %71, %84 : vector<1x128xf32>
    %91 = arith.mulf %77, %84 : vector<1x128xf32>
    %92 = arith.mulf %90, %87 : vector<1x128xf32>
    %93 = arith.subf %69, %92 : vector<1x128xf32>
    %94 = arith.mulf %90, %90 : vector<1x128xf32>
    %95 = arith.subf %73, %94 : vector<1x128xf32>
    %96 = arith.mulf %91, %87 : vector<1x128xf32>
    %97 = arith.subf %75, %96 : vector<1x128xf32>
    %98 = arith.mulf %91, %90 : vector<1x128xf32>
    %99 = arith.subf %79, %98 : vector<1x128xf32>
    %100 = arith.mulf %91, %91 : vector<1x128xf32>
    %101 = arith.subf %81, %100 : vector<1x128xf32>
    %cst_60 = arith.constant 9.99999968E-21 : f32
    %102 = vector.broadcast %cst_60 : f32 to vector<1x128xf32>
    %103 = arith.maximumf %95, %102 : vector<1x128xf32>
    %104 = math.rsqrt %103 : vector<1x128xf32>
    %105 = arith.mulf %103, %104 : vector<1x128xf32>
    %106 = arith.mulf %86, %105 : vector<1x128xf32>
    %107 = arith.mulf %93, %104 : vector<1x128xf32>
    %108 = arith.mulf %107, %107 : vector<1x128xf32>
    %109 = arith.addf %89, %108 : vector<1x128xf32>
    %110 = arith.mulf %99, %104 : vector<1x128xf32>
    %111 = arith.mulf %110, %107 : vector<1x128xf32>
    %112 = arith.subf %97, %111 : vector<1x128xf32>
    %113 = arith.mulf %110, %110 : vector<1x128xf32>
    %114 = arith.subf %101, %113 : vector<1x128xf32>
    %cst_61 = arith.constant 9.99999968E-21 : f32
    %115 = vector.broadcast %cst_61 : f32 to vector<1x128xf32>
    %116 = arith.maximumf %114, %115 : vector<1x128xf32>
    %117 = math.rsqrt %116 : vector<1x128xf32>
    %118 = arith.mulf %116, %117 : vector<1x128xf32>
    %119 = arith.mulf %106, %118 : vector<1x128xf32>
    %120 = arith.mulf %112, %117 : vector<1x128xf32>
    %121 = arith.mulf %120, %120 : vector<1x128xf32>
    %122 = arith.addf %109, %121 : vector<1x128xf32>
    %c0_62 = arith.constant 0 : index
    %c0_63 = arith.constant 0 : index
    %c0_64 = arith.constant 0 : index
    %123 = vector.load %arg1[%c0_62, %c0_63, %c0_64] : memref<5x1x128xf32, #tpu.memory_space<vmem>>, vector<1x1x128xf32>
    %124 = vector.shape_cast %123 : vector<1x1x128xf32> to vector<1x128xf32>
    %125 = math.log %124 : vector<1x128xf32>
    %126 = arith.subf %125, %22 : vector<1x128xf32>
    %cst_65 = arith.constant -3.67575407 : f32
    %127 = vector.broadcast %cst_65 : f32 to vector<1x128xf32>
    %128 = arith.addf %126, %127 : vector<1x128xf32>
    %cst_66 = arith.constant 5.000000e-01 : f32
    %129 = vector.broadcast %cst_66 : f32 to vector<1x128xf32>
    %130 = arith.mulf %129, %122 : vector<1x128xf32>
    %131 = arith.subf %128, %130 : vector<1x128xf32>
    %132 = math.log %119 : vector<1x128xf32>
    %133 = arith.subf %131, %132 : vector<1x128xf32>
    %cst_67 = arith.constant 1.000000e+00 : f32
    %134 = vector.broadcast %cst_67 : f32 to vector<1x128xf32>
    %c4_68 = arith.constant 4 : index
    %c0_69 = arith.constant 0 : index
    %c0_70 = arith.constant 0 : index
    %135 = vector.load %arg2[%c4_68, %c0_69, %c0_70] : memref<20x1x128xf32, #tpu.memory_space<vmem>>, vector<1x1x128xf32>
    %136 = vector.shape_cast %135 : vector<1x1x128xf32> to vector<1x128xf32>
    %137 = arith.subf %1, %136 : vector<1x128xf32>
    %c5_71 = arith.constant 5 : index
    %c0_72 = arith.constant 0 : index
    %c0_73 = arith.constant 0 : index
    %138 = vector.load %arg2[%c5_71, %c0_72, %c0_73] : memref<20x1x128xf32, #tpu.memory_space<vmem>>, vector<1x1x128xf32>
    %139 = vector.shape_cast %138 : vector<1x1x128xf32> to vector<1x128xf32>
    %140 = arith.subf %3, %139 : vector<1x128xf32>
    %c6_74 = arith.constant 6 : index
    %c0_75 = arith.constant 0 : index
    %c0_76 = arith.constant 0 : index
    %141 = vector.load %arg2[%c6_74, %c0_75, %c0_76] : memref<20x1x128xf32, #tpu.memory_space<vmem>>, vector<1x1x128xf32>
    %142 = vector.shape_cast %141 : vector<1x1x128xf32> to vector<1x128xf32>
    %143 = arith.subf %5, %142 : vector<1x128xf32>
    %c7_77 = arith.constant 7 : index
    %c0_78 = arith.constant 0 : index
    %c0_79 = arith.constant 0 : index
    %144 = vector.load %arg2[%c7_77, %c0_78, %c0_79] : memref<20x1x128xf32, #tpu.memory_space<vmem>>, vector<1x1x128xf32>
    %145 = vector.shape_cast %144 : vector<1x1x128xf32> to vector<1x128xf32>
    %146 = arith.subf %7, %145 : vector<1x128xf32>
    %c10 = arith.constant 10 : index
    %c0_80 = arith.constant 0 : index
    %c0_81 = arith.constant 0 : index
    %147 = vector.load %arg3[%c10, %c0_80, %c0_81] : memref<50x1x128xf32, #tpu.memory_space<vmem>>, vector<1x1x128xf32>
    %148 = vector.shape_cast %147 : vector<1x1x128xf32> to vector<1x128xf32>
    %c11 = arith.constant 11 : index
    %c0_82 = arith.constant 0 : index
    %c0_83 = arith.constant 0 : index
    %149 = vector.load %arg3[%c11, %c0_82, %c0_83] : memref<50x1x128xf32, #tpu.memory_space<vmem>>, vector<1x1x128xf32>
    %150 = vector.shape_cast %149 : vector<1x1x128xf32> to vector<1x128xf32>
    %c12 = arith.constant 12 : index
    %c0_84 = arith.constant 0 : index
    %c0_85 = arith.constant 0 : index
    %151 = vector.load %arg3[%c12, %c0_84, %c0_85] : memref<50x1x128xf32, #tpu.memory_space<vmem>>, vector<1x1x128xf32>
    %152 = vector.shape_cast %151 : vector<1x1x128xf32> to vector<1x128xf32>
    %c13 = arith.constant 13 : index
    %c0_86 = arith.constant 0 : index
    %c0_87 = arith.constant 0 : index
    %153 = vector.load %arg3[%c13, %c0_86, %c0_87] : memref<50x1x128xf32, #tpu.memory_space<vmem>>, vector<1x1x128xf32>
    %154 = vector.shape_cast %153 : vector<1x1x128xf32> to vector<1x128xf32>
    %c14 = arith.constant 14 : index
    %c0_88 = arith.constant 0 : index
    %c0_89 = arith.constant 0 : index
    %155 = vector.load %arg3[%c14, %c0_88, %c0_89] : memref<50x1x128xf32, #tpu.memory_space<vmem>>, vector<1x1x128xf32>
    %156 = vector.shape_cast %155 : vector<1x1x128xf32> to vector<1x128xf32>
    %c15 = arith.constant 15 : index
    %c0_90 = arith.constant 0 : index
    %c0_91 = arith.constant 0 : index
    %157 = vector.load %arg3[%c15, %c0_90, %c0_91] : memref<50x1x128xf32, #tpu.memory_space<vmem>>, vector<1x1x128xf32>
    %158 = vector.shape_cast %157 : vector<1x1x128xf32> to vector<1x128xf32>
    %c16 = arith.constant 16 : index
    %c0_92 = arith.constant 0 : index
    %c0_93 = arith.constant 0 : index
    %159 = vector.load %arg3[%c16, %c0_92, %c0_93] : memref<50x1x128xf32, #tpu.memory_space<vmem>>, vector<1x1x128xf32>
    %160 = vector.shape_cast %159 : vector<1x1x128xf32> to vector<1x128xf32>
    %c17 = arith.constant 17 : index
    %c0_94 = arith.constant 0 : index
    %c0_95 = arith.constant 0 : index
    %161 = vector.load %arg3[%c17, %c0_94, %c0_95] : memref<50x1x128xf32, #tpu.memory_space<vmem>>, vector<1x1x128xf32>
    %162 = vector.shape_cast %161 : vector<1x1x128xf32> to vector<1x128xf32>
    %c18 = arith.constant 18 : index
    %c0_96 = arith.constant 0 : index
    %c0_97 = arith.constant 0 : index
    %163 = vector.load %arg3[%c18, %c0_96, %c0_97] : memref<50x1x128xf32, #tpu.memory_space<vmem>>, vector<1x1x128xf32>
    %164 = vector.shape_cast %163 : vector<1x1x128xf32> to vector<1x128xf32>
    %c19 = arith.constant 19 : index
    %c0_98 = arith.constant 0 : index
    %c0_99 = arith.constant 0 : index
    %165 = vector.load %arg3[%c19, %c0_98, %c0_99] : memref<50x1x128xf32, #tpu.memory_space<vmem>>, vector<1x1x128xf32>
    %166 = vector.shape_cast %165 : vector<1x1x128xf32> to vector<1x128xf32>
    %cst_100 = arith.constant 9.99999968E-21 : f32
    %167 = vector.broadcast %cst_100 : f32 to vector<1x128xf32>
    %168 = arith.maximumf %148, %167 : vector<1x128xf32>
    %169 = math.rsqrt %168 : vector<1x128xf32>
    %170 = arith.mulf %168, %169 : vector<1x128xf32>
    %171 = arith.mulf %137, %169 : vector<1x128xf32>
    %172 = arith.mulf %171, %171 : vector<1x128xf32>
    %173 = arith.mulf %150, %169 : vector<1x128xf32>
    %174 = arith.mulf %154, %169 : vector<1x128xf32>
    %175 = arith.mulf %160, %169 : vector<1x128xf32>
    %176 = arith.mulf %173, %171 : vector<1x128xf32>
    %177 = arith.subf %140, %176 : vector<1x128xf32>
    %178 = arith.mulf %173, %173 : vector<1x128xf32>
    %179 = arith.subf %152, %178 : vector<1x128xf32>
    %180 = arith.mulf %174, %171 : vector<1x128xf32>
    %181 = arith.subf %143, %180 : vector<1x128xf32>
    %182 = arith.mulf %174, %173 : vector<1x128xf32>
    %183 = arith.subf %156, %182 : vector<1x128xf32>
    %184 = arith.mulf %174, %174 : vector<1x128xf32>
    %185 = arith.subf %158, %184 : vector<1x128xf32>
    %186 = arith.mulf %175, %171 : vector<1x128xf32>
    %187 = arith.subf %146, %186 : vector<1x128xf32>
    %188 = arith.mulf %175, %173 : vector<1x128xf32>
    %189 = arith.subf %162, %188 : vector<1x128xf32>
    %190 = arith.mulf %175, %174 : vector<1x128xf32>
    %191 = arith.subf %164, %190 : vector<1x128xf32>
    %192 = arith.mulf %175, %175 : vector<1x128xf32>
    %193 = arith.subf %166, %192 : vector<1x128xf32>
    %cst_101 = arith.constant 9.99999968E-21 : f32
    %194 = vector.broadcast %cst_101 : f32 to vector<1x128xf32>
    %195 = arith.maximumf %179, %194 : vector<1x128xf32>
    %196 = math.rsqrt %195 : vector<1x128xf32>
    %197 = arith.mulf %195, %196 : vector<1x128xf32>
    %198 = arith.mulf %170, %197 : vector<1x128xf32>
    %199 = arith.mulf %177, %196 : vector<1x128xf32>
    %200 = arith.mulf %199, %199 : vector<1x128xf32>
    %201 = arith.addf %172, %200 : vector<1x128xf32>
    %202 = arith.mulf %183, %196 : vector<1x128xf32>
    %203 = arith.mulf %189, %196 : vector<1x128xf32>
    %204 = arith.mulf %202, %199 : vector<1x128xf32>
    %205 = arith.subf %181, %204 : vector<1x128xf32>
    %206 = arith.mulf %202, %202 : vector<1x128xf32>
    %207 = arith.subf %185, %206 : vector<1x128xf32>
    %208 = arith.mulf %203, %199 : vector<1x128xf32>
    %209 = arith.subf %187, %208 : vector<1x128xf32>
    %210 = arith.mulf %203, %202 : vector<1x128xf32>
    %211 = arith.subf %191, %210 : vector<1x128xf32>
    %212 = arith.mulf %203, %203 : vector<1x128xf32>
    %213 = arith.subf %193, %212 : vector<1x128xf32>
    %cst_102 = arith.constant 9.99999968E-21 : f32
    %214 = vector.broadcast %cst_102 : f32 to vector<1x128xf32>
    %215 = arith.maximumf %207, %214 : vector<1x128xf32>
    %216 = math.rsqrt %215 : vector<1x128xf32>
    %217 = arith.mulf %215, %216 : vector<1x128xf32>
    %218 = arith.mulf %198, %217 : vector<1x128xf32>
    %219 = arith.mulf %205, %216 : vector<1x128xf32>
    %220 = arith.mulf %219, %219 : vector<1x128xf32>
    %221 = arith.addf %201, %220 : vector<1x128xf32>
    %222 = arith.mulf %211, %216 : vector<1x128xf32>
    %223 = arith.mulf %222, %219 : vector<1x128xf32>
    %224 = arith.subf %209, %223 : vector<1x128xf32>
    %225 = arith.mulf %222, %222 : vector<1x128xf32>
    %226 = arith.subf %213, %225 : vector<1x128xf32>
    %cst_103 = arith.constant 9.99999968E-21 : f32
    %227 = vector.broadcast %cst_103 : f32 to vector<1x128xf32>
    %228 = arith.maximumf %226, %227 : vector<1x128xf32>
    %229 = math.rsqrt %228 : vector<1x128xf32>
    %230 = arith.mulf %228, %229 : vector<1x128xf32>
    %231 = arith.mulf %218, %230 : vector<1x128xf32>
    %232 = arith.mulf %224, %229 : vector<1x128xf32>
    %233 = arith.mulf %232, %232 : vector<1x128xf32>
    %234 = arith.addf %221, %233 : vector<1x128xf32>
    %c1_104 = arith.constant 1 : index
    %c0_105 = arith.constant 0 : index
    %c0_106 = arith.constant 0 : index
    %235 = vector.load %arg1[%c1_104, %c0_105, %c0_106] : memref<5x1x128xf32, #tpu.memory_space<vmem>>, vector<1x1x128xf32>
    %236 = vector.shape_cast %235 : vector<1x1x128xf32> to vector<1x128xf32>
    %237 = math.log %236 : vector<1x128xf32>
    %238 = arith.subf %237, %22 : vector<1x128xf32>
    %cst_107 = arith.constant -3.67575407 : f32
    %239 = vector.broadcast %cst_107 : f32 to vector<1x128xf32>
    %240 = arith.addf %238, %239 : vector<1x128xf32>
    %cst_108 = arith.constant 5.000000e-01 : f32
    %241 = vector.broadcast %cst_108 : f32 to vector<1x128xf32>
    %242 = arith.mulf %241, %234 : vector<1x128xf32>
    %243 = arith.subf %240, %242 : vector<1x128xf32>
    %244 = math.log %231 : vector<1x128xf32>
    %245 = arith.subf %243, %244 : vector<1x128xf32>
    %246 = arith.maximumf %133, %245 : vector<1x128xf32>
    %247 = arith.subf %133, %246 : vector<1x128xf32>
    %248 = math.exp %247 : vector<1x128xf32>
    %249 = arith.mulf %134, %248 : vector<1x128xf32>
    %250 = arith.subf %245, %246 : vector<1x128xf32>
    %251 = math.exp %250 : vector<1x128xf32>
    %252 = arith.addf %249, %251 : vector<1x128xf32>
    %c8_109 = arith.constant 8 : index
    %c0_110 = arith.constant 0 : index
    %c0_111 = arith.constant 0 : index
    %253 = vector.load %arg2[%c8_109, %c0_110, %c0_111] : memref<20x1x128xf32, #tpu.memory_space<vmem>>, vector<1x1x128xf32>
    %254 = vector.shape_cast %253 : vector<1x1x128xf32> to vector<1x128xf32>
    %255 = arith.subf %1, %254 : vector<1x128xf32>
    %c9_112 = arith.constant 9 : index
    %c0_113 = arith.constant 0 : index
    %c0_114 = arith.constant 0 : index
    %256 = vector.load %arg2[%c9_112, %c0_113, %c0_114] : memref<20x1x128xf32, #tpu.memory_space<vmem>>, vector<1x1x128xf32>
    %257 = vector.shape_cast %256 : vector<1x1x128xf32> to vector<1x128xf32>
    %258 = arith.subf %3, %257 : vector<1x128xf32>
    %c10_115 = arith.constant 10 : index
    %c0_116 = arith.constant 0 : index
    %c0_117 = arith.constant 0 : index
    %259 = vector.load %arg2[%c10_115, %c0_116, %c0_117] : memref<20x1x128xf32, #tpu.memory_space<vmem>>, vector<1x1x128xf32>
    %260 = vector.shape_cast %259 : vector<1x1x128xf32> to vector<1x128xf32>
    %261 = arith.subf %5, %260 : vector<1x128xf32>
    %c11_118 = arith.constant 11 : index
    %c0_119 = arith.constant 0 : index
    %c0_120 = arith.constant 0 : index
    %262 = vector.load %arg2[%c11_118, %c0_119, %c0_120] : memref<20x1x128xf32, #tpu.memory_space<vmem>>, vector<1x1x128xf32>
    %263 = vector.shape_cast %262 : vector<1x1x128xf32> to vector<1x128xf32>
    %264 = arith.subf %7, %263 : vector<1x128xf32>
    %c20 = arith.constant 20 : index
    %c0_121 = arith.constant 0 : index
    %c0_122 = arith.constant 0 : index
    %265 = vector.load %arg3[%c20, %c0_121, %c0_122] : memref<50x1x128xf32, #tpu.memory_space<vmem>>, vector<1x1x128xf32>
    %266 = vector.shape_cast %265 : vector<1x1x128xf32> to vector<1x128xf32>
    %c21 = arith.constant 21 : index
    %c0_123 = arith.constant 0 : index
    %c0_124 = arith.constant 0 : index
    %267 = vector.load %arg3[%c21, %c0_123, %c0_124] : memref<50x1x128xf32, #tpu.memory_space<vmem>>, vector<1x1x128xf32>
    %268 = vector.shape_cast %267 : vector<1x1x128xf32> to vector<1x128xf32>
    %c22 = arith.constant 22 : index
    %c0_125 = arith.constant 0 : index
    %c0_126 = arith.constant 0 : index
    %269 = vector.load %arg3[%c22, %c0_125, %c0_126] : memref<50x1x128xf32, #tpu.memory_space<vmem>>, vector<1x1x128xf32>
    %270 = vector.shape_cast %269 : vector<1x1x128xf32> to vector<1x128xf32>
    %c23 = arith.constant 23 : index
    %c0_127 = arith.constant 0 : index
    %c0_128 = arith.constant 0 : index
    %271 = vector.load %arg3[%c23, %c0_127, %c0_128] : memref<50x1x128xf32, #tpu.memory_space<vmem>>, vector<1x1x128xf32>
    %272 = vector.shape_cast %271 : vector<1x1x128xf32> to vector<1x128xf32>
    %c24 = arith.constant 24 : index
    %c0_129 = arith.constant 0 : index
    %c0_130 = arith.constant 0 : index
    %273 = vector.load %arg3[%c24, %c0_129, %c0_130] : memref<50x1x128xf32, #tpu.memory_space<vmem>>, vector<1x1x128xf32>
    %274 = vector.shape_cast %273 : vector<1x1x128xf32> to vector<1x128xf32>
    %c25 = arith.constant 25 : index
    %c0_131 = arith.constant 0 : index
    %c0_132 = arith.constant 0 : index
    %275 = vector.load %arg3[%c25, %c0_131, %c0_132] : memref<50x1x128xf32, #tpu.memory_space<vmem>>, vector<1x1x128xf32>
    %276 = vector.shape_cast %275 : vector<1x1x128xf32> to vector<1x128xf32>
    %c26 = arith.constant 26 : index
    %c0_133 = arith.constant 0 : index
    %c0_134 = arith.constant 0 : index
    %277 = vector.load %arg3[%c26, %c0_133, %c0_134] : memref<50x1x128xf32, #tpu.memory_space<vmem>>, vector<1x1x128xf32>
    %278 = vector.shape_cast %277 : vector<1x1x128xf32> to vector<1x128xf32>
    %c27 = arith.constant 27 : index
    %c0_135 = arith.constant 0 : index
    %c0_136 = arith.constant 0 : index
    %279 = vector.load %arg3[%c27, %c0_135, %c0_136] : memref<50x1x128xf32, #tpu.memory_space<vmem>>, vector<1x1x128xf32>
    %280 = vector.shape_cast %279 : vector<1x1x128xf32> to vector<1x128xf32>
    %c28 = arith.constant 28 : index
    %c0_137 = arith.constant 0 : index
    %c0_138 = arith.constant 0 : index
    %281 = vector.load %arg3[%c28, %c0_137, %c0_138] : memref<50x1x128xf32, #tpu.memory_space<vmem>>, vector<1x1x128xf32>
    %282 = vector.shape_cast %281 : vector<1x1x128xf32> to vector<1x128xf32>
    %c29 = arith.constant 29 : index
    %c0_139 = arith.constant 0 : index
    %c0_140 = arith.constant 0 : index
    %283 = vector.load %arg3[%c29, %c0_139, %c0_140] : memref<50x1x128xf32, #tpu.memory_space<vmem>>, vector<1x1x128xf32>
    %284 = vector.shape_cast %283 : vector<1x1x128xf32> to vector<1x128xf32>
    %cst_141 = arith.constant 9.99999968E-21 : f32
    %285 = vector.broadcast %cst_141 : f32 to vector<1x128xf32>
    %286 = arith.maximumf %266, %285 : vector<1x128xf32>
    %287 = math.rsqrt %286 : vector<1x128xf32>
    %288 = arith.mulf %286, %287 : vector<1x128xf32>
    %289 = arith.mulf %255, %287 : vector<1x128xf32>
    %290 = arith.mulf %289, %289 : vector<1x128xf32>
    %291 = arith.mulf %268, %287 : vector<1x128xf32>
    %292 = arith.mulf %272, %287 : vector<1x128xf32>
    %293 = arith.mulf %278, %287 : vector<1x128xf32>
    %294 = arith.mulf %291, %289 : vector<1x128xf32>
    %295 = arith.subf %258, %294 : vector<1x128xf32>
    %296 = arith.mulf %291, %291 : vector<1x128xf32>
    %297 = arith.subf %270, %296 : vector<1x128xf32>
    %298 = arith.mulf %292, %289 : vector<1x128xf32>
    %299 = arith.subf %261, %298 : vector<1x128xf32>
    %300 = arith.mulf %292, %291 : vector<1x128xf32>
    %301 = arith.subf %274, %300 : vector<1x128xf32>
    %302 = arith.mulf %292, %292 : vector<1x128xf32>
    %303 = arith.subf %276, %302 : vector<1x128xf32>
    %304 = arith.mulf %293, %289 : vector<1x128xf32>
    %305 = arith.subf %264, %304 : vector<1x128xf32>
    %306 = arith.mulf %293, %291 : vector<1x128xf32>
    %307 = arith.subf %280, %306 : vector<1x128xf32>
    %308 = arith.mulf %293, %292 : vector<1x128xf32>
    %309 = arith.subf %282, %308 : vector<1x128xf32>
    %310 = arith.mulf %293, %293 : vector<1x128xf32>
    %311 = arith.subf %284, %310 : vector<1x128xf32>
    %cst_142 = arith.constant 9.99999968E-21 : f32
    %312 = vector.broadcast %cst_142 : f32 to vector<1x128xf32>
    %313 = arith.maximumf %297, %312 : vector<1x128xf32>
    %314 = math.rsqrt %313 : vector<1x128xf32>
    %315 = arith.mulf %313, %314 : vector<1x128xf32>
    %316 = arith.mulf %288, %315 : vector<1x128xf32>
    %317 = arith.mulf %295, %314 : vector<1x128xf32>
    %318 = arith.mulf %317, %317 : vector<1x128xf32>
    %319 = arith.addf %290, %318 : vector<1x128xf32>
    %320 = arith.mulf %301, %314 : vector<1x128xf32>
    %321 = arith.mulf %307, %314 : vector<1x128xf32>
    %322 = arith.mulf %320, %317 : vector<1x128xf32>
    %323 = arith.subf %299, %322 : vector<1x128xf32>
    %324 = arith.mulf %320, %320 : vector<1x128xf32>
    %325 = arith.subf %303, %324 : vector<1x128xf32>
    %326 = arith.mulf %321, %317 : vector<1x128xf32>
    %327 = arith.subf %305, %326 : vector<1x128xf32>
    %328 = arith.mulf %321, %320 : vector<1x128xf32>
    %329 = arith.subf %309, %328 : vector<1x128xf32>
    %330 = arith.mulf %321, %321 : vector<1x128xf32>
    %331 = arith.subf %311, %330 : vector<1x128xf32>
    %cst_143 = arith.constant 9.99999968E-21 : f32
    %332 = vector.broadcast %cst_143 : f32 to vector<1x128xf32>
    %333 = arith.maximumf %325, %332 : vector<1x128xf32>
    %334 = math.rsqrt %333 : vector<1x128xf32>
    %335 = arith.mulf %333, %334 : vector<1x128xf32>
    %336 = arith.mulf %316, %335 : vector<1x128xf32>
    %337 = arith.mulf %323, %334 : vector<1x128xf32>
    %338 = arith.mulf %337, %337 : vector<1x128xf32>
    %339 = arith.addf %319, %338 : vector<1x128xf32>
    %340 = arith.mulf %329, %334 : vector<1x128xf32>
    %341 = arith.mulf %340, %337 : vector<1x128xf32>
    %342 = arith.subf %327, %341 : vector<1x128xf32>
    %343 = arith.mulf %340, %340 : vector<1x128xf32>
    %344 = arith.subf %331, %343 : vector<1x128xf32>
    %cst_144 = arith.constant 9.99999968E-21 : f32
    %345 = vector.broadcast %cst_144 : f32 to vector<1x128xf32>
    %346 = arith.maximumf %344, %345 : vector<1x128xf32>
    %347 = math.rsqrt %346 : vector<1x128xf32>
    %348 = arith.mulf %346, %347 : vector<1x128xf32>
    %349 = arith.mulf %336, %348 : vector<1x128xf32>
    %350 = arith.mulf %342, %347 : vector<1x128xf32>
    %351 = arith.mulf %350, %350 : vector<1x128xf32>
    %352 = arith.addf %339, %351 : vector<1x128xf32>
    %c2_145 = arith.constant 2 : index
    %c0_146 = arith.constant 0 : index
    %c0_147 = arith.constant 0 : index
    %353 = vector.load %arg1[%c2_145, %c0_146, %c0_147] : memref<5x1x128xf32, #tpu.memory_space<vmem>>, vector<1x1x128xf32>
    %354 = vector.shape_cast %353 : vector<1x1x128xf32> to vector<1x128xf32>
    %355 = math.log %354 : vector<1x128xf32>
    %356 = arith.subf %355, %22 : vector<1x128xf32>
    %cst_148 = arith.constant -3.67575407 : f32
    %357 = vector.broadcast %cst_148 : f32 to vector<1x128xf32>
    %358 = arith.addf %356, %357 : vector<1x128xf32>
    %cst_149 = arith.constant 5.000000e-01 : f32
    %359 = vector.broadcast %cst_149 : f32 to vector<1x128xf32>
    %360 = arith.mulf %359, %352 : vector<1x128xf32>
    %361 = arith.subf %358, %360 : vector<1x128xf32>
    %362 = math.log %349 : vector<1x128xf32>
    %363 = arith.subf %361, %362 : vector<1x128xf32>
    %364 = arith.maximumf %246, %363 : vector<1x128xf32>
    %365 = arith.subf %246, %364 : vector<1x128xf32>
    %366 = math.exp %365 : vector<1x128xf32>
    %367 = arith.mulf %252, %366 : vector<1x128xf32>
    %368 = arith.subf %363, %364 : vector<1x128xf32>
    %369 = math.exp %368 : vector<1x128xf32>
    %370 = arith.addf %367, %369 : vector<1x128xf32>
    %c12_150 = arith.constant 12 : index
    %c0_151 = arith.constant 0 : index
    %c0_152 = arith.constant 0 : index
    %371 = vector.load %arg2[%c12_150, %c0_151, %c0_152] : memref<20x1x128xf32, #tpu.memory_space<vmem>>, vector<1x1x128xf32>
    %372 = vector.shape_cast %371 : vector<1x1x128xf32> to vector<1x128xf32>
    %373 = arith.subf %1, %372 : vector<1x128xf32>
    %c13_153 = arith.constant 13 : index
    %c0_154 = arith.constant 0 : index
    %c0_155 = arith.constant 0 : index
    %374 = vector.load %arg2[%c13_153, %c0_154, %c0_155] : memref<20x1x128xf32, #tpu.memory_space<vmem>>, vector<1x1x128xf32>
    %375 = vector.shape_cast %374 : vector<1x1x128xf32> to vector<1x128xf32>
    %376 = arith.subf %3, %375 : vector<1x128xf32>
    %c14_156 = arith.constant 14 : index
    %c0_157 = arith.constant 0 : index
    %c0_158 = arith.constant 0 : index
    %377 = vector.load %arg2[%c14_156, %c0_157, %c0_158] : memref<20x1x128xf32, #tpu.memory_space<vmem>>, vector<1x1x128xf32>
    %378 = vector.shape_cast %377 : vector<1x1x128xf32> to vector<1x128xf32>
    %379 = arith.subf %5, %378 : vector<1x128xf32>
    %c15_159 = arith.constant 15 : index
    %c0_160 = arith.constant 0 : index
    %c0_161 = arith.constant 0 : index
    %380 = vector.load %arg2[%c15_159, %c0_160, %c0_161] : memref<20x1x128xf32, #tpu.memory_space<vmem>>, vector<1x1x128xf32>
    %381 = vector.shape_cast %380 : vector<1x1x128xf32> to vector<1x128xf32>
    %382 = arith.subf %7, %381 : vector<1x128xf32>
    %c30 = arith.constant 30 : index
    %c0_162 = arith.constant 0 : index
    %c0_163 = arith.constant 0 : index
    %383 = vector.load %arg3[%c30, %c0_162, %c0_163] : memref<50x1x128xf32, #tpu.memory_space<vmem>>, vector<1x1x128xf32>
    %384 = vector.shape_cast %383 : vector<1x1x128xf32> to vector<1x128xf32>
    %c31 = arith.constant 31 : index
    %c0_164 = arith.constant 0 : index
    %c0_165 = arith.constant 0 : index
    %385 = vector.load %arg3[%c31, %c0_164, %c0_165] : memref<50x1x128xf32, #tpu.memory_space<vmem>>, vector<1x1x128xf32>
    %386 = vector.shape_cast %385 : vector<1x1x128xf32> to vector<1x128xf32>
    %c32 = arith.constant 32 : index
    %c0_166 = arith.constant 0 : index
    %c0_167 = arith.constant 0 : index
    %387 = vector.load %arg3[%c32, %c0_166, %c0_167] : memref<50x1x128xf32, #tpu.memory_space<vmem>>, vector<1x1x128xf32>
    %388 = vector.shape_cast %387 : vector<1x1x128xf32> to vector<1x128xf32>
    %c33 = arith.constant 33 : index
    %c0_168 = arith.constant 0 : index
    %c0_169 = arith.constant 0 : index
    %389 = vector.load %arg3[%c33, %c0_168, %c0_169] : memref<50x1x128xf32, #tpu.memory_space<vmem>>, vector<1x1x128xf32>
    %390 = vector.shape_cast %389 : vector<1x1x128xf32> to vector<1x128xf32>
    %c34 = arith.constant 34 : index
    %c0_170 = arith.constant 0 : index
    %c0_171 = arith.constant 0 : index
    %391 = vector.load %arg3[%c34, %c0_170, %c0_171] : memref<50x1x128xf32, #tpu.memory_space<vmem>>, vector<1x1x128xf32>
    %392 = vector.shape_cast %391 : vector<1x1x128xf32> to vector<1x128xf32>
    %c35 = arith.constant 35 : index
    %c0_172 = arith.constant 0 : index
    %c0_173 = arith.constant 0 : index
    %393 = vector.load %arg3[%c35, %c0_172, %c0_173] : memref<50x1x128xf32, #tpu.memory_space<vmem>>, vector<1x1x128xf32>
    %394 = vector.shape_cast %393 : vector<1x1x128xf32> to vector<1x128xf32>
    %c36 = arith.constant 36 : index
    %c0_174 = arith.constant 0 : index
    %c0_175 = arith.constant 0 : index
    %395 = vector.load %arg3[%c36, %c0_174, %c0_175] : memref<50x1x128xf32, #tpu.memory_space<vmem>>, vector<1x1x128xf32>
    %396 = vector.shape_cast %395 : vector<1x1x128xf32> to vector<1x128xf32>
    %c37 = arith.constant 37 : index
    %c0_176 = arith.constant 0 : index
    %c0_177 = arith.constant 0 : index
    %397 = vector.load %arg3[%c37, %c0_176, %c0_177] : memref<50x1x128xf32, #tpu.memory_space<vmem>>, vector<1x1x128xf32>
    %398 = vector.shape_cast %397 : vector<1x1x128xf32> to vector<1x128xf32>
    %c38 = arith.constant 38 : index
    %c0_178 = arith.constant 0 : index
    %c0_179 = arith.constant 0 : index
    %399 = vector.load %arg3[%c38, %c0_178, %c0_179] : memref<50x1x128xf32, #tpu.memory_space<vmem>>, vector<1x1x128xf32>
    %400 = vector.shape_cast %399 : vector<1x1x128xf32> to vector<1x128xf32>
    %c39 = arith.constant 39 : index
    %c0_180 = arith.constant 0 : index
    %c0_181 = arith.constant 0 : index
    %401 = vector.load %arg3[%c39, %c0_180, %c0_181] : memref<50x1x128xf32, #tpu.memory_space<vmem>>, vector<1x1x128xf32>
    %402 = vector.shape_cast %401 : vector<1x1x128xf32> to vector<1x128xf32>
    %cst_182 = arith.constant 9.99999968E-21 : f32
    %403 = vector.broadcast %cst_182 : f32 to vector<1x128xf32>
    %404 = arith.maximumf %384, %403 : vector<1x128xf32>
    %405 = math.rsqrt %404 : vector<1x128xf32>
    %406 = arith.mulf %404, %405 : vector<1x128xf32>
    %407 = arith.mulf %373, %405 : vector<1x128xf32>
    %408 = arith.mulf %407, %407 : vector<1x128xf32>
    %409 = arith.mulf %386, %405 : vector<1x128xf32>
    %410 = arith.mulf %390, %405 : vector<1x128xf32>
    %411 = arith.mulf %396, %405 : vector<1x128xf32>
    %412 = arith.mulf %409, %407 : vector<1x128xf32>
    %413 = arith.subf %376, %412 : vector<1x128xf32>
    %414 = arith.mulf %409, %409 : vector<1x128xf32>
    %415 = arith.subf %388, %414 : vector<1x128xf32>
    %416 = arith.mulf %410, %407 : vector<1x128xf32>
    %417 = arith.subf %379, %416 : vector<1x128xf32>
    %418 = arith.mulf %410, %409 : vector<1x128xf32>
    %419 = arith.subf %392, %418 : vector<1x128xf32>
    %420 = arith.mulf %410, %410 : vector<1x128xf32>
    %421 = arith.subf %394, %420 : vector<1x128xf32>
    %422 = arith.mulf %411, %407 : vector<1x128xf32>
    %423 = arith.subf %382, %422 : vector<1x128xf32>
    %424 = arith.mulf %411, %409 : vector<1x128xf32>
    %425 = arith.subf %398, %424 : vector<1x128xf32>
    %426 = arith.mulf %411, %410 : vector<1x128xf32>
    %427 = arith.subf %400, %426 : vector<1x128xf32>
    %428 = arith.mulf %411, %411 : vector<1x128xf32>
    %429 = arith.subf %402, %428 : vector<1x128xf32>
    %cst_183 = arith.constant 9.99999968E-21 : f32
    %430 = vector.broadcast %cst_183 : f32 to vector<1x128xf32>
    %431 = arith.maximumf %415, %430 : vector<1x128xf32>
    %432 = math.rsqrt %431 : vector<1x128xf32>
    %433 = arith.mulf %431, %432 : vector<1x128xf32>
    %434 = arith.mulf %406, %433 : vector<1x128xf32>
    %435 = arith.mulf %413, %432 : vector<1x128xf32>
    %436 = arith.mulf %435, %435 : vector<1x128xf32>
    %437 = arith.addf %408, %436 : vector<1x128xf32>
    %438 = arith.mulf %419, %432 : vector<1x128xf32>
    %439 = arith.mulf %425, %432 : vector<1x128xf32>
    %440 = arith.mulf %438, %435 : vector<1x128xf32>
    %441 = arith.subf %417, %440 : vector<1x128xf32>
    %442 = arith.mulf %438, %438 : vector<1x128xf32>
    %443 = arith.subf %421, %442 : vector<1x128xf32>
    %444 = arith.mulf %439, %435 : vector<1x128xf32>
    %445 = arith.subf %423, %444 : vector<1x128xf32>
    %446 = arith.mulf %439, %438 : vector<1x128xf32>
    %447 = arith.subf %427, %446 : vector<1x128xf32>
    %448 = arith.mulf %439, %439 : vector<1x128xf32>
    %449 = arith.subf %429, %448 : vector<1x128xf32>
    %cst_184 = arith.constant 9.99999968E-21 : f32
    %450 = vector.broadcast %cst_184 : f32 to vector<1x128xf32>
    %451 = arith.maximumf %443, %450 : vector<1x128xf32>
    %452 = math.rsqrt %451 : vector<1x128xf32>
    %453 = arith.mulf %451, %452 : vector<1x128xf32>
    %454 = arith.mulf %434, %453 : vector<1x128xf32>
    %455 = arith.mulf %441, %452 : vector<1x128xf32>
    %456 = arith.mulf %455, %455 : vector<1x128xf32>
    %457 = arith.addf %437, %456 : vector<1x128xf32>
    %458 = arith.mulf %447, %452 : vector<1x128xf32>
    %459 = arith.mulf %458, %455 : vector<1x128xf32>
    %460 = arith.subf %445, %459 : vector<1x128xf32>
    %461 = arith.mulf %458, %458 : vector<1x128xf32>
    %462 = arith.subf %449, %461 : vector<1x128xf32>
    %cst_185 = arith.constant 9.99999968E-21 : f32
    %463 = vector.broadcast %cst_185 : f32 to vector<1x128xf32>
    %464 = arith.maximumf %462, %463 : vector<1x128xf32>
    %465 = math.rsqrt %464 : vector<1x128xf32>
    %466 = arith.mulf %464, %465 : vector<1x128xf32>
    %467 = arith.mulf %454, %466 : vector<1x128xf32>
    %468 = arith.mulf %460, %465 : vector<1x128xf32>
    %469 = arith.mulf %468, %468 : vector<1x128xf32>
    %470 = arith.addf %457, %469 : vector<1x128xf32>
    %c3_186 = arith.constant 3 : index
    %c0_187 = arith.constant 0 : index
    %c0_188 = arith.constant 0 : index
    %471 = vector.load %arg1[%c3_186, %c0_187, %c0_188] : memref<5x1x128xf32, #tpu.memory_space<vmem>>, vector<1x1x128xf32>
    %472 = vector.shape_cast %471 : vector<1x1x128xf32> to vector<1x128xf32>
    %473 = math.log %472 : vector<1x128xf32>
    %474 = arith.subf %473, %22 : vector<1x128xf32>
    %cst_189 = arith.constant -3.67575407 : f32
    %475 = vector.broadcast %cst_189 : f32 to vector<1x128xf32>
    %476 = arith.addf %474, %475 : vector<1x128xf32>
    %cst_190 = arith.constant 5.000000e-01 : f32
    %477 = vector.broadcast %cst_190 : f32 to vector<1x128xf32>
    %478 = arith.mulf %477, %470 : vector<1x128xf32>
    %479 = arith.subf %476, %478 : vector<1x128xf32>
    %480 = math.log %467 : vector<1x128xf32>
    %481 = arith.subf %479, %480 : vector<1x128xf32>
    %482 = arith.maximumf %364, %481 : vector<1x128xf32>
    %483 = arith.subf %364, %482 : vector<1x128xf32>
    %484 = math.exp %483 : vector<1x128xf32>
    %485 = arith.mulf %370, %484 : vector<1x128xf32>
    %486 = arith.subf %481, %482 : vector<1x128xf32>
    %487 = math.exp %486 : vector<1x128xf32>
    %488 = arith.addf %485, %487 : vector<1x128xf32>
    %c16_191 = arith.constant 16 : index
    %c0_192 = arith.constant 0 : index
    %c0_193 = arith.constant 0 : index
    %489 = vector.load %arg2[%c16_191, %c0_192, %c0_193] : memref<20x1x128xf32, #tpu.memory_space<vmem>>, vector<1x1x128xf32>
    %490 = vector.shape_cast %489 : vector<1x1x128xf32> to vector<1x128xf32>
    %491 = arith.subf %1, %490 : vector<1x128xf32>
    %c17_194 = arith.constant 17 : index
    %c0_195 = arith.constant 0 : index
    %c0_196 = arith.constant 0 : index
    %492 = vector.load %arg2[%c17_194, %c0_195, %c0_196] : memref<20x1x128xf32, #tpu.memory_space<vmem>>, vector<1x1x128xf32>
    %493 = vector.shape_cast %492 : vector<1x1x128xf32> to vector<1x128xf32>
    %494 = arith.subf %3, %493 : vector<1x128xf32>
    %c18_197 = arith.constant 18 : index
    %c0_198 = arith.constant 0 : index
    %c0_199 = arith.constant 0 : index
    %495 = vector.load %arg2[%c18_197, %c0_198, %c0_199] : memref<20x1x128xf32, #tpu.memory_space<vmem>>, vector<1x1x128xf32>
    %496 = vector.shape_cast %495 : vector<1x1x128xf32> to vector<1x128xf32>
    %497 = arith.subf %5, %496 : vector<1x128xf32>
    %c19_200 = arith.constant 19 : index
    %c0_201 = arith.constant 0 : index
    %c0_202 = arith.constant 0 : index
    %498 = vector.load %arg2[%c19_200, %c0_201, %c0_202] : memref<20x1x128xf32, #tpu.memory_space<vmem>>, vector<1x1x128xf32>
    %499 = vector.shape_cast %498 : vector<1x1x128xf32> to vector<1x128xf32>
    %500 = arith.subf %7, %499 : vector<1x128xf32>
    %c40 = arith.constant 40 : index
    %c0_203 = arith.constant 0 : index
    %c0_204 = arith.constant 0 : index
    %501 = vector.load %arg3[%c40, %c0_203, %c0_204] : memref<50x1x128xf32, #tpu.memory_space<vmem>>, vector<1x1x128xf32>
    %502 = vector.shape_cast %501 : vector<1x1x128xf32> to vector<1x128xf32>
    %c41 = arith.constant 41 : index
    %c0_205 = arith.constant 0 : index
    %c0_206 = arith.constant 0 : index
    %503 = vector.load %arg3[%c41, %c0_205, %c0_206] : memref<50x1x128xf32, #tpu.memory_space<vmem>>, vector<1x1x128xf32>
    %504 = vector.shape_cast %503 : vector<1x1x128xf32> to vector<1x128xf32>
    %c42 = arith.constant 42 : index
    %c0_207 = arith.constant 0 : index
    %c0_208 = arith.constant 0 : index
    %505 = vector.load %arg3[%c42, %c0_207, %c0_208] : memref<50x1x128xf32, #tpu.memory_space<vmem>>, vector<1x1x128xf32>
    %506 = vector.shape_cast %505 : vector<1x1x128xf32> to vector<1x128xf32>
    %c43 = arith.constant 43 : index
    %c0_209 = arith.constant 0 : index
    %c0_210 = arith.constant 0 : index
    %507 = vector.load %arg3[%c43, %c0_209, %c0_210] : memref<50x1x128xf32, #tpu.memory_space<vmem>>, vector<1x1x128xf32>
    %508 = vector.shape_cast %507 : vector<1x1x128xf32> to vector<1x128xf32>
    %c44 = arith.constant 44 : index
    %c0_211 = arith.constant 0 : index
    %c0_212 = arith.constant 0 : index
    %509 = vector.load %arg3[%c44, %c0_211, %c0_212] : memref<50x1x128xf32, #tpu.memory_space<vmem>>, vector<1x1x128xf32>
    %510 = vector.shape_cast %509 : vector<1x1x128xf32> to vector<1x128xf32>
    %c45 = arith.constant 45 : index
    %c0_213 = arith.constant 0 : index
    %c0_214 = arith.constant 0 : index
    %511 = vector.load %arg3[%c45, %c0_213, %c0_214] : memref<50x1x128xf32, #tpu.memory_space<vmem>>, vector<1x1x128xf32>
    %512 = vector.shape_cast %511 : vector<1x1x128xf32> to vector<1x128xf32>
    %c46 = arith.constant 46 : index
    %c0_215 = arith.constant 0 : index
    %c0_216 = arith.constant 0 : index
    %513 = vector.load %arg3[%c46, %c0_215, %c0_216] : memref<50x1x128xf32, #tpu.memory_space<vmem>>, vector<1x1x128xf32>
    %514 = vector.shape_cast %513 : vector<1x1x128xf32> to vector<1x128xf32>
    %c47 = arith.constant 47 : index
    %c0_217 = arith.constant 0 : index
    %c0_218 = arith.constant 0 : index
    %515 = vector.load %arg3[%c47, %c0_217, %c0_218] : memref<50x1x128xf32, #tpu.memory_space<vmem>>, vector<1x1x128xf32>
    %516 = vector.shape_cast %515 : vector<1x1x128xf32> to vector<1x128xf32>
    %c48 = arith.constant 48 : index
    %c0_219 = arith.constant 0 : index
    %c0_220 = arith.constant 0 : index
    %517 = vector.load %arg3[%c48, %c0_219, %c0_220] : memref<50x1x128xf32, #tpu.memory_space<vmem>>, vector<1x1x128xf32>
    %518 = vector.shape_cast %517 : vector<1x1x128xf32> to vector<1x128xf32>
    %c49 = arith.constant 49 : index
    %c0_221 = arith.constant 0 : index
    %c0_222 = arith.constant 0 : index
    %519 = vector.load %arg3[%c49, %c0_221, %c0_222] : memref<50x1x128xf32, #tpu.memory_space<vmem>>, vector<1x1x128xf32>
    %520 = vector.shape_cast %519 : vector<1x1x128xf32> to vector<1x128xf32>
    %cst_223 = arith.constant 9.99999968E-21 : f32
    %521 = vector.broadcast %cst_223 : f32 to vector<1x128xf32>
    %522 = arith.maximumf %502, %521 : vector<1x128xf32>
    %523 = math.rsqrt %522 : vector<1x128xf32>
    %524 = arith.mulf %522, %523 : vector<1x128xf32>
    %525 = arith.mulf %491, %523 : vector<1x128xf32>
    %526 = arith.mulf %525, %525 : vector<1x128xf32>
    %527 = arith.mulf %504, %523 : vector<1x128xf32>
    %528 = arith.mulf %508, %523 : vector<1x128xf32>
    %529 = arith.mulf %514, %523 : vector<1x128xf32>
    %530 = arith.mulf %527, %525 : vector<1x128xf32>
    %531 = arith.subf %494, %530 : vector<1x128xf32>
    %532 = arith.mulf %527, %527 : vector<1x128xf32>
    %533 = arith.subf %506, %532 : vector<1x128xf32>
    %534 = arith.mulf %528, %525 : vector<1x128xf32>
    %535 = arith.subf %497, %534 : vector<1x128xf32>
    %536 = arith.mulf %528, %527 : vector<1x128xf32>
    %537 = arith.subf %510, %536 : vector<1x128xf32>
    %538 = arith.mulf %528, %528 : vector<1x128xf32>
    %539 = arith.subf %512, %538 : vector<1x128xf32>
    %540 = arith.mulf %529, %525 : vector<1x128xf32>
    %541 = arith.subf %500, %540 : vector<1x128xf32>
    %542 = arith.mulf %529, %527 : vector<1x128xf32>
    %543 = arith.subf %516, %542 : vector<1x128xf32>
    %544 = arith.mulf %529, %528 : vector<1x128xf32>
    %545 = arith.subf %518, %544 : vector<1x128xf32>
    %546 = arith.mulf %529, %529 : vector<1x128xf32>
    %547 = arith.subf %520, %546 : vector<1x128xf32>
    %cst_224 = arith.constant 9.99999968E-21 : f32
    %548 = vector.broadcast %cst_224 : f32 to vector<1x128xf32>
    %549 = arith.maximumf %533, %548 : vector<1x128xf32>
    %550 = math.rsqrt %549 : vector<1x128xf32>
    %551 = arith.mulf %549, %550 : vector<1x128xf32>
    %552 = arith.mulf %524, %551 : vector<1x128xf32>
    %553 = arith.mulf %531, %550 : vector<1x128xf32>
    %554 = arith.mulf %553, %553 : vector<1x128xf32>
    %555 = arith.addf %526, %554 : vector<1x128xf32>
    %556 = arith.mulf %537, %550 : vector<1x128xf32>
    %557 = arith.mulf %543, %550 : vector<1x128xf32>
    %558 = arith.mulf %556, %553 : vector<1x128xf32>
    %559 = arith.subf %535, %558 : vector<1x128xf32>
    %560 = arith.mulf %556, %556 : vector<1x128xf32>
    %561 = arith.subf %539, %560 : vector<1x128xf32>
    %562 = arith.mulf %557, %553 : vector<1x128xf32>
    %563 = arith.subf %541, %562 : vector<1x128xf32>
    %564 = arith.mulf %557, %556 : vector<1x128xf32>
    %565 = arith.subf %545, %564 : vector<1x128xf32>
    %566 = arith.mulf %557, %557 : vector<1x128xf32>
    %567 = arith.subf %547, %566 : vector<1x128xf32>
    %cst_225 = arith.constant 9.99999968E-21 : f32
    %568 = vector.broadcast %cst_225 : f32 to vector<1x128xf32>
    %569 = arith.maximumf %561, %568 : vector<1x128xf32>
    %570 = math.rsqrt %569 : vector<1x128xf32>
    %571 = arith.mulf %569, %570 : vector<1x128xf32>
    %572 = arith.mulf %552, %571 : vector<1x128xf32>
    %573 = arith.mulf %559, %570 : vector<1x128xf32>
    %574 = arith.mulf %573, %573 : vector<1x128xf32>
    %575 = arith.addf %555, %574 : vector<1x128xf32>
    %576 = arith.mulf %565, %570 : vector<1x128xf32>
    %577 = arith.mulf %576, %573 : vector<1x128xf32>
    %578 = arith.subf %563, %577 : vector<1x128xf32>
    %579 = arith.mulf %576, %576 : vector<1x128xf32>
    %580 = arith.subf %567, %579 : vector<1x128xf32>
    %cst_226 = arith.constant 9.99999968E-21 : f32
    %581 = vector.broadcast %cst_226 : f32 to vector<1x128xf32>
    %582 = arith.maximumf %580, %581 : vector<1x128xf32>
    %583 = math.rsqrt %582 : vector<1x128xf32>
    %584 = arith.mulf %582, %583 : vector<1x128xf32>
    %585 = arith.mulf %572, %584 : vector<1x128xf32>
    %586 = arith.mulf %578, %583 : vector<1x128xf32>
    %587 = arith.mulf %586, %586 : vector<1x128xf32>
    %588 = arith.addf %575, %587 : vector<1x128xf32>
    %c4_227 = arith.constant 4 : index
    %c0_228 = arith.constant 0 : index
    %c0_229 = arith.constant 0 : index
    %589 = vector.load %arg1[%c4_227, %c0_228, %c0_229] : memref<5x1x128xf32, #tpu.memory_space<vmem>>, vector<1x1x128xf32>
    %590 = vector.shape_cast %589 : vector<1x1x128xf32> to vector<1x128xf32>
    %591 = math.log %590 : vector<1x128xf32>
    %592 = arith.subf %591, %22 : vector<1x128xf32>
    %cst_230 = arith.constant -3.67575407 : f32
    %593 = vector.broadcast %cst_230 : f32 to vector<1x128xf32>
    %594 = arith.addf %592, %593 : vector<1x128xf32>
    %cst_231 = arith.constant 5.000000e-01 : f32
    %595 = vector.broadcast %cst_231 : f32 to vector<1x128xf32>
    %596 = arith.mulf %595, %588 : vector<1x128xf32>
    %597 = arith.subf %594, %596 : vector<1x128xf32>
    %598 = math.log %585 : vector<1x128xf32>
    %599 = arith.subf %597, %598 : vector<1x128xf32>
    %600 = arith.maximumf %482, %599 : vector<1x128xf32>
    %601 = arith.subf %482, %600 : vector<1x128xf32>
    %602 = math.exp %601 : vector<1x128xf32>
    %603 = arith.mulf %488, %602 : vector<1x128xf32>
    %604 = arith.subf %599, %600 : vector<1x128xf32>
    %605 = math.exp %604 : vector<1x128xf32>
    %606 = arith.addf %603, %605 : vector<1x128xf32>
    %607 = math.log %606 : vector<1x128xf32>
    %608 = arith.addf %600, %607 : vector<1x128xf32>
    %c0_232 = arith.constant 0 : index
    %c0_233 = arith.constant 0 : index
    %609 = vector.load %arg5[%c0_232, %c0_233] : memref<1x128xf32, #tpu.memory_space<vmem>>, vector<1x128xf32>
    tpu.vector_store %arg5[%c0_232, %c0_233], %608 {strides = array<i32>} : memref<1x128xf32, #tpu.memory_space<vmem>>, vector<1x128xf32>,
    return
  }
  func.func @transform_0(%arg0: i32) -> (i32, i32, i32) {
    %c0_i32 = arith.constant 0 : i32
    %c0_i32_0 = arith.constant 0 : i32
    %c0_i32_1 = arith.constant 0 : i32
    return %c0_i32, %arg0, %c0_i32_0 : i32, i32, i32
  }
  func.func @transform_1(%arg0: i32) -> (i32, i32, i32) {
    %c0_i32 = arith.constant 0 : i32
    %c0_i32_0 = arith.constant 0 : i32
    %c0_i32_1 = arith.constant 0 : i32
    return %c0_i32, %arg0, %c0_i32_0 : i32, i32, i32
  }
  func.func @transform_2(%arg0: i32) -> (i32, i32, i32) {
    %c0_i32 = arith.constant 0 : i32
    %c0_i32_0 = arith.constant 0 : i32
    %c0_i32_1 = arith.constant 0 : i32
    return %c0_i32, %arg0, %c0_i32_0 : i32, i32, i32
  }
  func.func @transform_3(%arg0: i32) -> (i32, i32, i32) {
    %c0_i32 = arith.constant 0 : i32
    %c0_i32_0 = arith.constant 0 : i32
    %c0_i32_1 = arith.constant 0 : i32
    return %c0_i32, %arg0, %c0_i32_0 : i32, i32, i32
  }
  func.func @transform_4(%arg0: i32) -> (i32, i32) {
    %c0_i32 = arith.constant 0 : i32
    %c0_i32_0 = arith.constant 0 : i32
    return %arg0, %c0_i32 : i32, i32
  }
}

</mosaic_0001>

<llo_original>
// kernel: tpu_custom_call.1
$region0: #{tpu_custom_call.1}
  #allocation0 [shape = 'u32[]', space=smem, size = 0x4, offset = 0x4, fixed_abs, tag = 'smem constant byte address 0x4 - core index']
  #allocation1 [shape = 'u32[72,128]{1,0:T(1,128)}', space=vmem, size = 0x9000, scoped, tag = 'internal scratch']
  %s0 = inlined_call_operand.hbm [shape: f32[5,1,128], index: 0, kind: input, shape index: {}]
  %s1 = inlined_call_operand.hbm [shape: f32[20,1,128], index: 1, kind: input, shape index: {}]
  %s2 = inlined_call_operand.hbm [shape: f32[50,1,128], index: 2, kind: input, shape index: {}]
  %s3 = inlined_call_operand.hbm [shape: f32[4,1,128], index: 3, kind: input, shape index: {}]
  %s4 = inlined_call_operand.hbm [shape: f32[1,128], index: 4, kind: output, shape index: {}]
  %s5 = sld [smem:[#allocation0]]
  $region42: #{tpu_custom_call.1} parent=0
    _
  %s7 = ssub.s32 1, %s5
  %s8 = scalar_select 0, %s7, %s5
  $region1: #{tpu_custom_call.1} parent=0
    #allocation2 [shape = 'u8[2560]{0}', space=vmem, size = 0xc00, scoped, tag = 'input window, operand 0, single buffered']
    #allocation3 [shape = 's32[1]{0}', space=sflag, size = 0x4, scoped, tag = 'scoped memory for tpu_custom_call.1']
    #allocation4 [shape = 's32[1]{0}', space=sflag, size = 0x4, scoped, tag = 'scoped memory for tpu_custom_call.1']
    #allocation5 [shape = 'u8[10240]{0}', space=vmem, size = 0x2800, scoped, tag = 'input window, operand 1, single buffered']
    #allocation6 [shape = 's32[1]{0}', space=sflag, size = 0x4, scoped, tag = 'scoped memory for tpu_custom_call.1']
    #allocation7 [shape = 'u8[25600]{0}', space=vmem, size = 0x6400, scoped, tag = 'input window, operand 2, single buffered']
    #allocation8 [shape = 'u8[2048]{0}', space=vmem, size = 0x800, scoped, tag = 'input window, operand 3, single buffered']
    #allocation9 [shape = 's32[1]{0}', space=sflag, size = 0x4, scoped, tag = 'scoped memory for tpu_custom_call.1']
    #allocation10 [shape = 'u8[512]{0}', space=vmem, size = 0x400, scoped, tag = 'output window, operand 0, single buffered']
    %9 = vsyncpa [#allocation3], 0
    %10 = vsyncpa [#allocation6], 0
    %11 = vsyncpa [#allocation9], 0
    %12 = vsyncpa [#allocation4], 0
    // Predicated region
    $region2: #{tpu_custom_call.1} parent=1 // pred_check
      _
    $region3: #{tpu_custom_call.1} parent=1 // pred_check_branch
      %14 = sbr.rel (0) target = $region5
    $region4: #{tpu_custom_call.1} parent=1 // pred_region
      %16 = vsyncadd [#allocation3], 0
      %s17 = sshll.u32 %s0, 4
      %s18 = int_to_ptr.hbm [resolvable:$true] %s17
      %s19 = sshll.u32 [#allocation2], 4
      %s20 = int_to_ptr.vmem [resolvable:$true] %s19
      %25 = dma.hbm_to_vmem [thread:$0]  %s18, 80, %s20, [#allocation3], 16, 16, 1
    $region5: #{tpu_custom_call.1} parent=1 // pred_fallthru
      _
    // Predicated region
    $region6: #{tpu_custom_call.1} parent=1 // pred_check
      _
    $region7: #{tpu_custom_call.1} parent=1 // pred_check_branch
      %27 = sbr.rel (0) target = $region9
    $region8: #{tpu_custom_call.1} parent=1 // pred_region
      %29 = vsyncadd [#allocation6], 0
      %s30 = sshll.u32 %s1, 4
      %s31 = int_to_ptr.hbm [resolvable:$true] %s30
      %s32 = sshll.u32 [#allocation5], 4
      %s33 = int_to_ptr.vmem [resolvable:$true] %s32
      %38 = dma.hbm_to_vmem [thread:$0]  %s31, 320, %s33, [#allocation6], 16, 16, 1
    $region9: #{tpu_custom_call.1} parent=1 // pred_fallthru
      _
    // Predicated region
    $region10: #{tpu_custom_call.1} parent=1 // pred_check
      _
    $region11: #{tpu_custom_call.1} parent=1 // pred_check_branch
      %40 = sbr.rel (0) target = $region13
    $region12: #{tpu_custom_call.1} parent=1 // pred_region
      %42 = vsyncadd [#allocation6], 0
      %s43 = sshll.u32 %s2, 4
      %s44 = int_to_ptr.hbm [resolvable:$true] %s43
      %s45 = sshll.u32 [#allocation7], 4
      %s46 = int_to_ptr.vmem [resolvable:$true] %s45
      %51 = dma.hbm_to_vmem [thread:$0]  %s44, 800, %s46, [#allocation6], 16, 16, 1
    $region13: #{tpu_custom_call.1} parent=1 // pred_fallthru
      _
    // Predicated region
    $region14: #{tpu_custom_call.1} parent=1 // pred_check
      _
    $region15: #{tpu_custom_call.1} parent=1 // pred_check_branch
      %53 = sbr.rel (0) target = $region17
    $region16: #{tpu_custom_call.1} parent=1 // pred_region
      %55 = vsyncadd [#allocation9], 0
      %s56 = sshll.u32 %s3, 4
      %s57 = int_to_ptr.hbm [resolvable:$true] %s56
      %s58 = sshll.u32 [#allocation8], 4
      %s59 = int_to_ptr.vmem [resolvable:$true] %s58
      %64 = dma.hbm_to_vmem [thread:$0]  %s57, 64, %s59, [#allocation9], 16, 16, 1
    $region17: #{tpu_custom_call.1} parent=1 // pred_fallthru
      _
    // Predicated region
    $region18: #{tpu_custom_call.1} parent=1 // pred_check
      _
    $region19: #{tpu_custom_call.1} parent=1 // pred_check_branch
      %66 = sbr.rel (0) target = $region21
    $region20: #{tpu_custom_call.1} parent=1 // pred_region
      %68 = dma.done [#allocation3], 80
    $region21: #{tpu_custom_call.1} parent=1 // pred_fallthru
      _
    // Predicated region
    $region22: #{tpu_custom_call.1} parent=1 // pred_check
      _
    $region23: #{tpu_custom_call.1} parent=1 // pred_check_branch
      %70 = sbr.rel (0) target = $region25
    $region24: #{tpu_custom_call.1} parent=1 // pred_region
      %72 = dma.done [#allocation6], 320
    $region25: #{tpu_custom_call.1} parent=1 // pred_fallthru
      _
    // Predicated region
    $region26: #{tpu_custom_call.1} parent=1 // pred_check
      _
    $region27: #{tpu_custom_call.1} parent=1 // pred_check_branch
      %74 = sbr.rel (0) target = $region29
    $region28: #{tpu_custom_call.1} parent=1 // pred_region
      %76 = dma.done [#allocation6], 800
    $region29: #{tpu_custom_call.1} parent=1 // pred_fallthru
      _
    // Predicated region
    $region30: #{tpu_custom_call.1} parent=1 // pred_check
      _
    $region31: #{tpu_custom_call.1} parent=1 // pred_check_branch
      %78 = sbr.rel (0) target = $region33
    $region32: #{tpu_custom_call.1} parent=1 // pred_region
      %80 = dma.done [#allocation9], 64
    $region33: #{tpu_custom_call.1} parent=1 // pred_fallthru
      _
    %v81 = vld [vmem:[#allocation8] sm:$0x1]
    %s82 = scalar_lea.vmem [#allocation8], 1
    %v83 = vld [vmem:[%s82] sm:$0x1]
    %s84 = scalar_lea.vmem [#allocation8], 2
    %v85 = vld [vmem:[%s84] sm:$0x1]
    %s86 = scalar_lea.vmem [#allocation8], 3
    %v87 = vld [vmem:[%s86] sm:$0x1]
    %v88 = vld [vmem:[#allocation2] sm:$0x1]
    %s89 = scalar_lea.vmem [#allocation2], 1
    %v90 = vld [vmem:[%s89] sm:$0x1]
    %v91 = vadd.f32 %v88, %v90
    %s92 = scalar_lea.vmem [#allocation2], 2
    %v93 = vld [vmem:[%s92] sm:$0x1]
    %v94 = vadd.f32 %v91, %v93
    %s95 = scalar_lea.vmem [#allocation2], 3
    %v96 = vld [vmem:[%s95] sm:$0x1]
    %v97 = vadd.f32 %v94, %v96
    %s98 = scalar_lea.vmem [#allocation2], 4
    %v99 = vld [vmem:[%s98] sm:$0x1]
    %v100 = vadd.f32 %v97, %v99
    %v101 = vlog2.pop %v100
    %v102 = vmul.f32 %v101, 0.6931472
    %v103 = vld [vmem:[#allocation5] sm:$0x1]
    %v104 = vsub.f32 %v81, %v103
    %s105 = scalar_lea.vmem [#allocation5], 1
    %v106 = vld [vmem:[%s105] sm:$0x1]
    %v107 = vsub.f32 %v83, %v106
    %s108 = scalar_lea.vmem [#allocation5], 2
    %v109 = vld [vmem:[%s108] sm:$0x1]
    %v110 = vsub.f32 %v85, %v109
    %s111 = scalar_lea.vmem [#allocation5], 3
    %v112 = vld [vmem:[%s111] sm:$0x1]
    %v113 = vsub.f32 %v87, %v112
    %v114 = vld [vmem:[#allocation7] sm:$0x1]
    %s115 = scalar_lea.vmem [#allocation7], 1
    %v116 = vld [vmem:[%s115] sm:$0x1]
    %s117 = scalar_lea.vmem [#allocation7], 2
    %v118 = vld [vmem:[%s117] sm:$0x1]
    %s119 = scalar_lea.vmem [#allocation7], 3
    %v120 = vld [vmem:[%s119] sm:$0x1]
    %s121 = scalar_lea.vmem [#allocation7], 4
    %v122 = vld [vmem:[%s121] sm:$0x1]
    %s123 = scalar_lea.vmem [#allocation7], 5
    %v124 = vld [vmem:[%s123] sm:$0x1]
    %s125 = scalar_lea.vmem [#allocation7], 6
    %v126 = vld [vmem:[%s125] sm:$0x1]
    %s127 = scalar_lea.vmem [#allocation7], 7
    %v128 = vld [vmem:[%s127] sm:$0x1]
    %s129 = scalar_lea.vmem [#allocation7], 8
    %v130 = vld [vmem:[%s129] sm:$0x1]
    %s131 = scalar_lea.vmem [#allocation7], 9
    %v132 = vld [vmem:[%s131] sm:$0x1]
    %v133 = vmax.f32 %v114, 1e-20
    %v134 = vrsqrt.pop %v133
    %v135 = vmul.f32 %v134, %v133
    %v136 = vmul.f32 %v135, %v134
    %v137 = vmul.f32 0.5, %v136
    %v138 = vsub.f32 1.5, %v137
    %v139 = vmul.f32 %v134, %v138
    %vm140 = vweird.f32 %v133
    %vm141 = vweird.f32 %v134
    %vm142 = vmor %vm140, %vm141
    %v143 = vsel %vm142, %v134, %v139
    %v144 = vmul.f32 %v133, %v143
    %v145 = vmul.f32 %v104, %v143
    %v146 = vmul.f32 %v145, %v145
    %v147 = vmul.f32 %v116, %v143
    %v148 = vmul.f32 %v120, %v143
    %v149 = vmul.f32 %v126, %v143
    %v150 = vmul.f32 %v147, %v145
    %v151 = vsub.f32 %v107, %v150
    %v152 = vmul.f32 %v147, %v147
    %v153 = vsub.f32 %v118, %v152
    %v154 = vmul.f32 %v148, %v145
    %v155 = vsub.f32 %v110, %v154
    %v156 = vmul.f32 %v148, %v147
    %v157 = vsub.f32 %v122, %v156
    %v158 = vmul.f32 %v148, %v148
    %v159 = vsub.f32 %v124, %v158
    %v160 = vmul.f32 %v149, %v145
    %v161 = vsub.f32 %v113, %v160
    %v162 = vmul.f32 %v149, %v147
    %v163 = vsub.f32 %v128, %v162
    %v164 = vmul.f32 %v149, %v148
    %v165 = vsub.f32 %v130, %v164
    %v166 = vmul.f32 %v149, %v149
    %v167 = vsub.f32 %v132, %v166
    %v168 = vmax.f32 %v153, 1e-20
    %v169 = vrsqrt.pop %v168
    %v170 = vmul.f32 %v169, %v168
    %v171 = vmul.f32 %v170, %v169
    %v172 = vmul.f32 0.5, %v171
    %v173 = vsub.f32 1.5, %v172
    %v174 = vmul.f32 %v169, %v173
    %vm175 = vweird.f32 %v168
    %vm176 = vweird.f32 %v169
    %vm177 = vmor %vm175, %vm176
    %v178 = vsel %vm177, %v169, %v174
    %v179 = vmul.f32 %v168, %v178
    %v180 = vmul.f32 %v144, %v179
    %v181 = vmul.f32 %v151, %v178
    %v182 = vmul.f32 %v181, %v181
    %v183 = vadd.f32 %v146, %v182
    %v184 = vmul.f32 %v157, %v178
    %v185 = vmul.f32 %v163, %v178
    %v186 = vmul.f32 %v184, %v181
    %v187 = vsub.f32 %v155, %v186
    %v188 = vmul.f32 %v184, %v184
    %v189 = vsub.f32 %v159, %v188
    %v190 = vmul.f32 %v185, %v181
    %v191 = vsub.f32 %v161, %v190
    %v192 = vmul.f32 %v185, %v184
    %v193 = vsub.f32 %v165, %v192
    %v194 = vmul.f32 %v185, %v185
    %v195 = vsub.f32 %v167, %v194
    %v196 = vmax.f32 %v189, 1e-20
    %v197 = vrsqrt.pop %v196
    %v198 = vmul.f32 %v197, %v196
    %v199 = vmul.f32 %v198, %v197
    %v200 = vmul.f32 0.5, %v199
    %v201 = vsub.f32 1.5, %v200
    %v202 = vmul.f32 %v197, %v201
    %vm203 = vweird.f32 %v196
    %vm204 = vweird.f32 %v197
    %vm205 = vmor %vm203, %vm204
    %v206 = vsel %vm205, %v197, %v202
    %v207 = vmul.f32 %v196, %v206
    %v208 = vmul.f32 %v180, %v207
    %v209 = vmul.f32 %v187, %v206
    %v210 = vmul.f32 %v209, %v209
    %v211 = vadd.f32 %v183, %v210
    %v212 = vmul.f32 %v193, %v206
    %v213 = vmul.f32 %v212, %v209
    %v214 = vsub.f32 %v191, %v213
    %v215 = vmul.f32 %v212, %v212
    %v216 = vsub.f32 %v195, %v215
    %v217 = vmax.f32 %v216, 1e-20
    %v218 = vrsqrt.pop %v217
    %v219 = vmul.f32 %v218, %v217
    %v220 = vmul.f32 %v219, %v218
    %v221 = vmul.f32 0.5, %v220
    %v222 = vsub.f32 1.5, %v221
    %v223 = vmul.f32 %v218, %v222
    %vm224 = vweird.f32 %v217
    %vm225 = vweird.f32 %v218
    %vm226 = vmor %vm224, %vm225
    %v227 = vsel %vm226, %v218, %v223
    %v228 = vmul.f32 %v217, %v227
    %v229 = vmul.f32 %v208, %v228
    %v230 = vmul.f32 %v214, %v227
    %v231 = vmul.f32 %v230, %v230
    %v232 = vadd.f32 %v211, %v231
    %v233 = vlog2.pop %v88
    %v234 = vmul.f32 %v233, 0.6931472
    %v235 = vsub.f32 %v234, %v102
    %v236 = vadd.f32 %v235, -3.675754
    %v237 = vmul.f32 %v232, 0.5
    %v238 = vsub.f32 %v236, %v237
    %v239 = vlog2.pop %v229
    %v240 = vmul.f32 %v239, 0.6931472
    %v241 = vsub.f32 %v238, %v240
    %s242 = scalar_lea.vmem [#allocation5], 4
    %v243 = vld [vmem:[%s242] sm:$0x1]
    %v244 = vsub.f32 %v81, %v243
    %s245 = scalar_lea.vmem [#allocation5], 5
    %v246 = vld [vmem:[%s245] sm:$0x1]
    %v247 = vsub.f32 %v83, %v246
    %s248 = scalar_lea.vmem [#allocation5], 6
    %v249 = vld [vmem:[%s248] sm:$0x1]
    %v250 = vsub.f32 %v85, %v249
    %s251 = scalar_lea.vmem [#allocation5], 7
    %v252 = vld [vmem:[%s251] sm:$0x1]
    %v253 = vsub.f32 %v87, %v252
    %s254 = scalar_lea.vmem [#allocation7], 10
    %v255 = vld [vmem:[%s254] sm:$0x1]
    %s256 = scalar_lea.vmem [#allocation7], 11
    %v257 = vld [vmem:[%s256] sm:$0x1]
    %s258 = scalar_lea.vmem [#allocation7], 12
    %v259 = vld [vmem:[%s258] sm:$0x1]
    %s260 = scalar_lea.vmem [#allocation7], 13
    %v261 = vld [vmem:[%s260] sm:$0x1]
    %s262 = scalar_lea.vmem [#allocation7], 14
    %v263 = vld [vmem:[%s262] sm:$0x1]
    %s264 = scalar_lea.vmem [#allocation7], 15
    %v265 = vld [vmem:[%s264] sm:$0x1]
    %s266 = scalar_lea.vmem [#allocation7], 16
    %v267 = vld [vmem:[%s266] sm:$0x1]
    %s268 = scalar_lea.vmem [#allocation7], 17
    %v269 = vld [vmem:[%s268] sm:$0x1]
    %s270 = scalar_lea.vmem [#allocation7], 18
    %v271 = vld [vmem:[%s270] sm:$0x1]
    %s272 = scalar_lea.vmem [#allocation7], 19
    %v273 = vld [vmem:[%s272] sm:$0x1]
    %v274 = vmax.f32 %v255, 1e-20
    %v275 = vrsqrt.pop %v274
    %v276 = vmul.f32 %v275, %v274
    %v277 = vmul.f32 %v276, %v275
    %v278 = vmul.f32 0.5, %v277
    %v279 = vsub.f32 1.5, %v278
    %v280 = vmul.f32 %v275, %v279
    %vm281 = vweird.f32 %v274
    %vm282 = vweird.f32 %v275
    %vm283 = vmor %vm281, %vm282
    %v284 = vsel %vm283, %v275, %v280
    %v285 = vmul.f32 %v274, %v284
    %v286 = vmul.f32 %v244, %v284
    %v287 = vmul.f32 %v286, %v286
    %v288 = vmul.f32 %v257, %v284
    %v289 = vmul.f32 %v261, %v284
    %v290 = vmul.f32 %v267, %v284
    %v291 = vmul.f32 %v288, %v286
    %v292 = vsub.f32 %v247, %v291
    %v293 = vmul.f32 %v288, %v288
    %v294 = vsub.f32 %v259, %v293
    %v295 = vmul.f32 %v289, %v286
    %v296 = vsub.f32 %v250, %v295
    %v297 = vmul.f32 %v289, %v288
    %v298 = vsub.f32 %v263, %v297
    %v299 = vmul.f32 %v289, %v289
    %v300 = vsub.f32 %v265, %v299
    %v301 = vmul.f32 %v290, %v286
    %v302 = vsub.f32 %v253, %v301
    %v303 = vmul.f32 %v290, %v288
    %v304 = vsub.f32 %v269, %v303
    %v305 = vmul.f32 %v290, %v289
    %v306 = vsub.f32 %v271, %v305
    %v307 = vmul.f32 %v290, %v290
    %v308 = vsub.f32 %v273, %v307
    %v309 = vmax.f32 %v294, 1e-20
    %v310 = vrsqrt.pop %v309
    %v311 = vmul.f32 %v310, %v309
    %v312 = vmul.f32 %v311, %v310
    %v313 = vmul.f32 0.5, %v312
    %v314 = vsub.f32 1.5, %v313
    %v315 = vmul.f32 %v310, %v314
    %vm316 = vweird.f32 %v309
    %vm317 = vweird.f32 %v310
    %vm318 = vmor %vm316, %vm317
    %v319 = vsel %vm318, %v310, %v315
    %v320 = vmul.f32 %v309, %v319
    %v321 = vmul.f32 %v285, %v320
    %v322 = vmul.f32 %v292, %v319
    %v323 = vmul.f32 %v322, %v322
    %v324 = vadd.f32 %v287, %v323
    %v325 = vmul.f32 %v298, %v319
    %v326 = vmul.f32 %v304, %v319
    %v327 = vmul.f32 %v325, %v322
    %v328 = vsub.f32 %v296, %v327
    %v329 = vmul.f32 %v325, %v325
    %v330 = vsub.f32 %v300, %v329
    %v331 = vmul.f32 %v326, %v322
    %v332 = vsub.f32 %v302, %v331
    %v333 = vmul.f32 %v326, %v325
    %v334 = vsub.f32 %v306, %v333
    %v335 = vmul.f32 %v326, %v326
    %v336 = vsub.f32 %v308, %v335
    %v337 = vmax.f32 %v330, 1e-20
    %v338 = vrsqrt.pop %v337
    %v339 = vmul.f32 %v338, %v337
    %v340 = vmul.f32 %v339, %v338
    %v341 = vmul.f32 0.5, %v340
    %v342 = vsub.f32 1.5, %v341
    %v343 = vmul.f32 %v338, %v342
    %vm344 = vweird.f32 %v337
    %vm345 = vweird.f32 %v338
    %vm346 = vmor %vm344, %vm345
    %v347 = vsel %vm346, %v338, %v343
    %v348 = vmul.f32 %v337, %v347
    %v349 = vmul.f32 %v321, %v348
    %v350 = vmul.f32 %v328, %v347
    %v351 = vmul.f32 %v350, %v350
    %v352 = vadd.f32 %v324, %v351
    %v353 = vmul.f32 %v334, %v347
    %v354 = vmul.f32 %v353, %v350
    %v355 = vsub.f32 %v332, %v354
    %v356 = vmul.f32 %v353, %v353
    %v357 = vsub.f32 %v336, %v356
    %v358 = vmax.f32 %v357, 1e-20
    %v359 = vrsqrt.pop %v358
    %v360 = vmul.f32 %v359, %v358
    %v361 = vmul.f32 %v360, %v359
    %v362 = vmul.f32 0.5, %v361
    %v363 = vsub.f32 1.5, %v362
    %v364 = vmul.f32 %v359, %v363
    %vm365 = vweird.f32 %v358
    %vm366 = vweird.f32 %v359
    %vm367 = vmor %vm365, %vm366
    %v368 = vsel %vm367, %v359, %v364
    %v369 = vmul.f32 %v358, %v368
    %v370 = vmul.f32 %v349, %v369
    %v371 = vmul.f32 %v355, %v368
    %v372 = vmul.f32 %v371, %v371
    %v373 = vadd.f32 %v352, %v372
    %v374 = vlog2.pop %v90
    %v375 = vmul.f32 %v374, 0.6931472
    %v376 = vsub.f32 %v375, %v102
    %v377 = vadd.f32 %v376, -3.675754
    %v378 = vmul.f32 %v373, 0.5
    %v379 = vsub.f32 %v377, %v378
    %v380 = vlog2.pop %v370
    %v381 = vmul.f32 %v380, 0.6931472
    %v382 = vsub.f32 %v379, %v381
    %v383 = vmax.f32 %v241, %v382
    %v384 = vsub.f32 %v241, %v383
    %v385 = vmul.f32 %v384, 1.442695
    %v386 = vpow.pop %v385
    %v387 = vsub.f32 %v382, %v383
    %v388 = vmul.f32 %v387, 1.442695
    %v389 = vpow.pop %v388
    %v390 = vadd.f32 %v386, %v389
    %s391 = scalar_lea.vmem [#allocation5], 8
    %v392 = vld [vmem:[%s391] sm:$0x1]
    %v393 = vsub.f32 %v81, %v392
    %s394 = scalar_lea.vmem [#allocation5], 9
    %v395 = vld [vmem:[%s394] sm:$0x1]
    %v396 = vsub.f32 %v83, %v395
    %s397 = scalar_lea.vmem [#allocation5], 10
    %v398 = vld [vmem:[%s397] sm:$0x1]
    %v399 = vsub.f32 %v85, %v398
    %s400 = scalar_lea.vmem [#allocation5], 11
    %v401 = vld [vmem:[%s400] sm:$0x1]
    %v402 = vsub.f32 %v87, %v401
    %s403 = scalar_lea.vmem [#allocation7], 20
    %v404 = vld [vmem:[%s403] sm:$0x1]
    %s405 = scalar_lea.vmem [#allocation7], 21
    %v406 = vld [vmem:[%s405] sm:$0x1]
    %s407 = scalar_lea.vmem [#allocation7], 22
    %v408 = vld [vmem:[%s407] sm:$0x1]
    %s409 = scalar_lea.vmem [#allocation7], 23
    %v410 = vld [vmem:[%s409] sm:$0x1]
    %s411 = scalar_lea.vmem [#allocation7], 24
    %v412 = vld [vmem:[%s411] sm:$0x1]
    %s413 = scalar_lea.vmem [#allocation7], 25
    %v414 = vld [vmem:[%s413] sm:$0x1]
    %s415 = scalar_lea.vmem [#allocation7], 26
    %v416 = vld [vmem:[%s415] sm:$0x1]
    %s417 = scalar_lea.vmem [#allocation7], 27
    %v418 = vld [vmem:[%s417] sm:$0x1]
    %s419 = scalar_lea.vmem [#allocation7], 28
    %v420 = vld [vmem:[%s419] sm:$0x1]
    %s421 = scalar_lea.vmem [#allocation7], 29
    %v422 = vld [vmem:[%s421] sm:$0x1]
    %v423 = vmax.f32 %v404, 1e-20
    %v424 = vrsqrt.pop %v423
    %v425 = vmul.f32 %v424, %v423
    %v426 = vmul.f32 %v425, %v424
    %v427 = vmul.f32 0.5, %v426
    %v428 = vsub.f32 1.5, %v427
    %v429 = vmul.f32 %v424, %v428
    %vm430 = vweird.f32 %v423
    %vm431 = vweird.f32 %v424
    %vm432 = vmor %vm430, %vm431
    %v433 = vsel %vm432, %v424, %v429
    %v434 = vmul.f32 %v423, %v433
    %v435 = vmul.f32 %v393, %v433
    %v436 = vmul.f32 %v435, %v435
    %v437 = vmul.f32 %v406, %v433
    %v438 = vmul.f32 %v410, %v433
    %v439 = vmul.f32 %v416, %v433
    %v440 = vmul.f32 %v437, %v435
    %v441 = vsub.f32 %v396, %v440
    %v442 = vmul.f32 %v437, %v437
    %v443 = vsub.f32 %v408, %v442
    %v444 = vmul.f32 %v438, %v435
    %v445 = vsub.f32 %v399, %v444
    %v446 = vmul.f32 %v438, %v437
    %v447 = vsub.f32 %v412, %v446
    %v448 = vmul.f32 %v438, %v438
    %v449 = vsub.f32 %v414, %v448
    %v450 = vmul.f32 %v439, %v435
    %v451 = vsub.f32 %v402, %v450
    %v452 = vmul.f32 %v439, %v437
    %v453 = vsub.f32 %v418, %v452
    %v454 = vmul.f32 %v439, %v438
    %v455 = vsub.f32 %v420, %v454
    %v456 = vmul.f32 %v439, %v439
    %v457 = vsub.f32 %v422, %v456
    %v458 = vmax.f32 %v443, 1e-20
    %v459 = vrsqrt.pop %v458
    %v460 = vmul.f32 %v459, %v458
    %v461 = vmul.f32 %v460, %v459
    %v462 = vmul.f32 0.5, %v461
    %v463 = vsub.f32 1.5, %v462
    %v464 = vmul.f32 %v459, %v463
    %vm465 = vweird.f32 %v458
    %vm466 = vweird.f32 %v459
    %vm467 = vmor %vm465, %vm466
    %v468 = vsel %vm467, %v459, %v464
    %v469 = vmul.f32 %v458, %v468
    %v470 = vmul.f32 %v434, %v469
    %v471 = vmul.f32 %v441, %v468
    %v472 = vmul.f32 %v471, %v471
    %v473 = vadd.f32 %v436, %v472
    %v474 = vmul.f32 %v447, %v468
    %v475 = vmul.f32 %v453, %v468
    %v476 = vmul.f32 %v474, %v471
    %v477 = vsub.f32 %v445, %v476
    %v478 = vmul.f32 %v474, %v474
    %v479 = vsub.f32 %v449, %v478
    %v480 = vmul.f32 %v475, %v471
    %v481 = vsub.f32 %v451, %v480
    %v482 = vmul.f32 %v475, %v474
    %v483 = vsub.f32 %v455, %v482
    %v484 = vmul.f32 %v475, %v475
    %v485 = vsub.f32 %v457, %v484
    %v486 = vmax.f32 %v479, 1e-20
    %v487 = vrsqrt.pop %v486
    %v488 = vmul.f32 %v487, %v486
    %v489 = vmul.f32 %v488, %v487
    %v490 = vmul.f32 0.5, %v489
    %v491 = vsub.f32 1.5, %v490
    %v492 = vmul.f32 %v487, %v491
    %vm493 = vweird.f32 %v486
    %vm494 = vweird.f32 %v487
    %vm495 = vmor %vm493, %vm494
    %v496 = vsel %vm495, %v487, %v492
    %v497 = vmul.f32 %v486, %v496
    %v498 = vmul.f32 %v470, %v497
    %v499 = vmul.f32 %v477, %v496
    %v500 = vmul.f32 %v499, %v499
    %v501 = vadd.f32 %v473, %v500
    %v502 = vmul.f32 %v483, %v496
    %v503 = vmul.f32 %v502, %v499
    %v504 = vsub.f32 %v481, %v503
    %v505 = vmul.f32 %v502, %v502
    %v506 = vsub.f32 %v485, %v505
    %v507 = vmax.f32 %v506, 1e-20
    %v508 = vrsqrt.pop %v507
    %v509 = vmul.f32 %v508, %v507
    %v510 = vmul.f32 %v509, %v508
    %v511 = vmul.f32 0.5, %v510
    %v512 = vsub.f32 1.5, %v511
    %v513 = vmul.f32 %v508, %v512
    %vm514 = vweird.f32 %v507
    %vm515 = vweird.f32 %v508
    %vm516 = vmor %vm514, %vm515
    %v517 = vsel %vm516, %v508, %v513
    %v518 = vmul.f32 %v507, %v517
    %v519 = vmul.f32 %v498, %v518
    %v520 = vmul.f32 %v504, %v517
    %v521 = vmul.f32 %v520, %v520
    %v522 = vadd.f32 %v501, %v521
    %v523 = vlog2.pop %v93
    %v524 = vmul.f32 %v523, 0.6931472
    %v525 = vsub.f32 %v524, %v102
    %v526 = vadd.f32 %v525, -3.675754
    %v527 = vmul.f32 %v522, 0.5
    %v528 = vsub.f32 %v526, %v527
    %v529 = vlog2.pop %v519
    %v530 = vmul.f32 %v529, 0.6931472
    %v531 = vsub.f32 %v528, %v530
    %v532 = vmax.f32 %v383, %v531
    %v533 = vsub.f32 %v383, %v532
    %v534 = vmul.f32 %v533, 1.442695
    %v535 = vpow.pop %v534
    %v536 = vmul.f32 %v390, %v535
    %v537 = vsub.f32 %v531, %v532
    %v538 = vmul.f32 %v537, 1.442695
    %v539 = vpow.pop %v538
    %v540 = vadd.f32 %v536, %v539
    %s541 = scalar_lea.vmem [#allocation5], 12
    %v542 = vld [vmem:[%s541] sm:$0x1]
    %v543 = vsub.f32 %v81, %v542
    %s544 = scalar_lea.vmem [#allocation5], 13
    %v545 = vld [vmem:[%s544] sm:$0x1]
    %v546 = vsub.f32 %v83, %v545
    %s547 = scalar_lea.vmem [#allocation5], 14
    %v548 = vld [vmem:[%s547] sm:$0x1]
    %v549 = vsub.f32 %v85, %v548
    %s550 = scalar_lea.vmem [#allocation5], 15
    %v551 = vld [vmem:[%s550] sm:$0x1]
    %v552 = vsub.f32 %v87, %v551
    %s553 = scalar_lea.vmem [#allocation7], 30
    %v554 = vld [vmem:[%s553] sm:$0x1]
    %s555 = scalar_lea.vmem [#allocation7], 31
    %v556 = vld [vmem:[%s555] sm:$0x1]
    %s557 = scalar_lea.vmem [#allocation7], 32
    %v558 = vld [vmem:[%s557] sm:$0x1]
    %s559 = scalar_lea.vmem [#allocation7], 33
    %v560 = vld [vmem:[%s559] sm:$0x1]
    %s561 = scalar_lea.vmem [#allocation7], 34
    %v562 = vld [vmem:[%s561] sm:$0x1]
    %s563 = scalar_lea.vmem [#allocation7], 35
    %v564 = vld [vmem:[%s563] sm:$0x1]
    %s565 = scalar_lea.vmem [#allocation7], 36
    %v566 = vld [vmem:[%s565] sm:$0x1]
    %s567 = scalar_lea.vmem [#allocation7], 37
    %v568 = vld [vmem:[%s567] sm:$0x1]
    %s569 = scalar_lea.vmem [#allocation7], 38
    %v570 = vld [vmem:[%s569] sm:$0x1]
    %s571 = scalar_lea.vmem [#allocation7], 39
    %v572 = vld [vmem:[%s571] sm:$0x1]
    %v573 = vmax.f32 %v554, 1e-20
    %v574 = vrsqrt.pop %v573
    %v575 = vmul.f32 %v574, %v573
    %v576 = vmul.f32 %v575, %v574
    %v577 = vmul.f32 0.5, %v576
    %v578 = vsub.f32 1.5, %v577
    %v579 = vmul.f32 %v574, %v578
    %vm580 = vweird.f32 %v573
    %vm581 = vweird.f32 %v574
    %vm582 = vmor %vm580, %vm581
    %v583 = vsel %vm582, %v574, %v579
    %v584 = vmul.f32 %v573, %v583
    %v585 = vmul.f32 %v543, %v583
    %v586 = vmul.f32 %v585, %v585
    %v587 = vmul.f32 %v556, %v583
    %v588 = vmul.f32 %v560, %v583
    %v589 = vmul.f32 %v566, %v583
    %v590 = vmul.f32 %v587, %v585
    %v591 = vsub.f32 %v546, %v590
    %v592 = vmul.f32 %v587, %v587
    %v593 = vsub.f32 %v558, %v592
    %v594 = vmul.f32 %v588, %v585
    %v595 = vsub.f32 %v549, %v594
    %v596 = vmul.f32 %v588, %v587
    %v597 = vsub.f32 %v562, %v596
    %v598 = vmul.f32 %v588, %v588
    %v599 = vsub.f32 %v564, %v598
    %v600 = vmul.f32 %v589, %v585
    %v601 = vsub.f32 %v552, %v600
    %v602 = vmul.f32 %v589, %v587
    %v603 = vsub.f32 %v568, %v602
    %v604 = vmul.f32 %v589, %v588
    %v605 = vsub.f32 %v570, %v604
    %v606 = vmul.f32 %v589, %v589
    %v607 = vsub.f32 %v572, %v606
    %v608 = vmax.f32 %v593, 1e-20
    %v609 = vrsqrt.pop %v608
    %v610 = vmul.f32 %v609, %v608
    %v611 = vmul.f32 %v610, %v609
    %v612 = vmul.f32 0.5, %v611
    %v613 = vsub.f32 1.5, %v612
    %v614 = vmul.f32 %v609, %v613
    %vm615 = vweird.f32 %v608
    %vm616 = vweird.f32 %v609
    %vm617 = vmor %vm615, %vm616
    %v618 = vsel %vm617, %v609, %v614
    %v619 = vmul.f32 %v608, %v618
    %v620 = vmul.f32 %v584, %v619
    %v621 = vmul.f32 %v591, %v618
    %v622 = vmul.f32 %v621, %v621
    %v623 = vadd.f32 %v586, %v622
    %v624 = vmul.f32 %v597, %v618
    %v625 = vmul.f32 %v603, %v618
    %v626 = vmul.f32 %v624, %v621
    %v627 = vsub.f32 %v595, %v626
    %v628 = vmul.f32 %v624, %v624
    %v629 = vsub.f32 %v599, %v628
    %v630 = vmul.f32 %v625, %v621
    %v631 = vsub.f32 %v601, %v630
    %v632 = vmul.f32 %v625, %v624
    %v633 = vsub.f32 %v605, %v632
    %v634 = vmul.f32 %v625, %v625
    %v635 = vsub.f32 %v607, %v634
    %v636 = vmax.f32 %v629, 1e-20
    %v637 = vrsqrt.pop %v636
    %v638 = vmul.f32 %v637, %v636
    %v639 = vmul.f32 %v638, %v637
    %v640 = vmul.f32 0.5, %v639
    %v641 = vsub.f32 1.5, %v640
    %v642 = vmul.f32 %v637, %v641
    %vm643 = vweird.f32 %v636
    %vm644 = vweird.f32 %v637
    %vm645 = vmor %vm643, %vm644
    %v646 = vsel %vm645, %v637, %v642
    %v647 = vmul.f32 %v636, %v646
    %v648 = vmul.f32 %v620, %v647
    %v649 = vmul.f32 %v627, %v646
    %v650 = vmul.f32 %v649, %v649
    %v651 = vadd.f32 %v623, %v650
    %v652 = vmul.f32 %v633, %v646
    %v653 = vmul.f32 %v652, %v649
    %v654 = vsub.f32 %v631, %v653
    %v655 = vmul.f32 %v652, %v652
    %v656 = vsub.f32 %v635, %v655
    %v657 = vmax.f32 %v656, 1e-20
    %v658 = vrsqrt.pop %v657
    %v659 = vmul.f32 %v658, %v657
    %v660 = vmul.f32 %v659, %v658
    %v661 = vmul.f32 0.5, %v660
    %v662 = vsub.f32 1.5, %v661
    %v663 = vmul.f32 %v658, %v662
    %vm664 = vweird.f32 %v657
    %vm665 = vweird.f32 %v658
    %vm666 = vmor %vm664, %vm665
    %v667 = vsel %vm666, %v658, %v663
    %v668 = vmul.f32 %v657, %v667
    %v669 = vmul.f32 %v648, %v668
    %v670 = vmul.f32 %v654, %v667
    %v671 = vmul.f32 %v670, %v670
    %v672 = vadd.f32 %v651, %v671
    %v673 = vlog2.pop %v96
    %v674 = vmul.f32 %v673, 0.6931472
    %v675 = vsub.f32 %v674, %v102
    %v676 = vadd.f32 %v675, -3.675754
    %v677 = vmul.f32 %v672, 0.5
    %v678 = vsub.f32 %v676, %v677
    %v679 = vlog2.pop %v669
    %v680 = vmul.f32 %v679, 0.6931472
    %v681 = vsub.f32 %v678, %v680
    %v682 = vmax.f32 %v532, %v681
    %v683 = vsub.f32 %v532, %v682
    %v684 = vmul.f32 %v683, 1.442695
    %v685 = vpow.pop %v684
    %v686 = vmul.f32 %v540, %v685
    %v687 = vsub.f32 %v681, %v682
    %v688 = vmul.f32 %v687, 1.442695
    %v689 = vpow.pop %v688
    %v690 = vadd.f32 %v686, %v689
    %s691 = scalar_lea.vmem [#allocation5], 16
    %v692 = vld [vmem:[%s691] sm:$0x1]
    %v693 = vsub.f32 %v81, %v692
    %s694 = scalar_lea.vmem [#allocation5], 17
    %v695 = vld [vmem:[%s694] sm:$0x1]
    %v696 = vsub.f32 %v83, %v695
    %s697 = scalar_lea.vmem [#allocation5], 18
    %v698 = vld [vmem:[%s697] sm:$0x1]
    %v699 = vsub.f32 %v85, %v698
    %s700 = scalar_lea.vmem [#allocation5], 19
    %v701 = vld [vmem:[%s700] sm:$0x1]
    %v702 = vsub.f32 %v87, %v701
    %s703 = scalar_lea.vmem [#allocation7], 40
    %v704 = vld [vmem:[%s703] sm:$0x1]
    %s705 = scalar_lea.vmem [#allocation7], 41
    %v706 = vld [vmem:[%s705] sm:$0x1]
    %s707 = scalar_lea.vmem [#allocation7], 42
    %v708 = vld [vmem:[%s707] sm:$0x1]
    %s709 = scalar_lea.vmem [#allocation7], 43
    %v710 = vld [vmem:[%s709] sm:$0x1]
    %s711 = scalar_lea.vmem [#allocation7], 44
    %v712 = vld [vmem:[%s711] sm:$0x1]
    %s713 = scalar_lea.vmem [#allocation7], 45
    %v714 = vld [vmem:[%s713] sm:$0x1]
    %s715 = scalar_lea.vmem [#allocation7], 46
    %v716 = vld [vmem:[%s715] sm:$0x1]
    %s717 = scalar_lea.vmem [#allocation7], 47
    %v718 = vld [vmem:[%s717] sm:$0x1]
    %s719 = scalar_lea.vmem [#allocation7], 48
    %v720 = vld [vmem:[%s719] sm:$0x1]
    %s721 = scalar_lea.vmem [#allocation7], 49
    %v722 = vld [vmem:[%s721] sm:$0x1]
    %v723 = vmax.f32 %v704, 1e-20
    %v724 = vrsqrt.pop %v723
    %v725 = vmul.f32 %v724, %v723
    %v726 = vmul.f32 %v725, %v724
    %v727 = vmul.f32 0.5, %v726
    %v728 = vsub.f32 1.5, %v727
    %v729 = vmul.f32 %v724, %v728
    %vm730 = vweird.f32 %v723
    %vm731 = vweird.f32 %v724
    %vm732 = vmor %vm730, %vm731
    %v733 = vsel %vm732, %v724, %v729
    %v734 = vmul.f32 %v723, %v733
    %v735 = vmul.f32 %v693, %v733
    %v736 = vmul.f32 %v735, %v735
    %v737 = vmul.f32 %v706, %v733
    %v738 = vmul.f32 %v710, %v733
    %v739 = vmul.f32 %v716, %v733
    %v740 = vmul.f32 %v737, %v735
    %v741 = vsub.f32 %v696, %v740
    %v742 = vmul.f32 %v737, %v737
    %v743 = vsub.f32 %v708, %v742
    %v744 = vmul.f32 %v738, %v735
    %v745 = vsub.f32 %v699, %v744
    %v746 = vmul.f32 %v738, %v737
    %v747 = vsub.f32 %v712, %v746
    %v748 = vmul.f32 %v738, %v738
    %v749 = vsub.f32 %v714, %v748
    %v750 = vmul.f32 %v739, %v735
    %v751 = vsub.f32 %v702, %v750
    %v752 = vmul.f32 %v739, %v737
    %v753 = vsub.f32 %v718, %v752
    %v754 = vmul.f32 %v739, %v738
    %v755 = vsub.f32 %v720, %v754
    %v756 = vmul.f32 %v739, %v739
    %v757 = vsub.f32 %v722, %v756
    %v758 = vmax.f32 %v743, 1e-20
    %v759 = vrsqrt.pop %v758
    %v760 = vmul.f32 %v759, %v758
    %v761 = vmul.f32 %v760, %v759
    %v762 = vmul.f32 0.5, %v761
    %v763 = vsub.f32 1.5, %v762
    %v764 = vmul.f32 %v759, %v763
    %vm765 = vweird.f32 %v758
    %vm766 = vweird.f32 %v759
    %vm767 = vmor %vm765, %vm766
    %v768 = vsel %vm767, %v759, %v764
    %v769 = vmul.f32 %v758, %v768
    %v770 = vmul.f32 %v734, %v769
    %v771 = vmul.f32 %v741, %v768
    %v772 = vmul.f32 %v771, %v771
    %v773 = vadd.f32 %v736, %v772
    %v774 = vmul.f32 %v747, %v768
    %v775 = vmul.f32 %v753, %v768
    %v776 = vmul.f32 %v774, %v771
    %v777 = vsub.f32 %v745, %v776
    %v778 = vmul.f32 %v774, %v774
    %v779 = vsub.f32 %v749, %v778
    %v780 = vmul.f32 %v775, %v771
    %v781 = vsub.f32 %v751, %v780
    %v782 = vmul.f32 %v775, %v774
    %v783 = vsub.f32 %v755, %v782
    %v784 = vmul.f32 %v775, %v775
    %v785 = vsub.f32 %v757, %v784
    %v786 = vmax.f32 %v779, 1e-20
    %v787 = vrsqrt.pop %v786
    %v788 = vmul.f32 %v787, %v786
    %v789 = vmul.f32 %v788, %v787
    %v790 = vmul.f32 0.5, %v789
    %v791 = vsub.f32 1.5, %v790
    %v792 = vmul.f32 %v787, %v791
    %vm793 = vweird.f32 %v786
    %vm794 = vweird.f32 %v787
    %vm795 = vmor %vm793, %vm794
    %v796 = vsel %vm795, %v787, %v792
    %v797 = vmul.f32 %v786, %v796
    %v798 = vmul.f32 %v770, %v797
    %v799 = vmul.f32 %v777, %v796
    %v800 = vmul.f32 %v799, %v799
    %v801 = vadd.f32 %v773, %v800
    %v802 = vmul.f32 %v783, %v796
    %v803 = vmul.f32 %v802, %v799
    %v804 = vsub.f32 %v781, %v803
    %v805 = vmul.f32 %v802, %v802
    %v806 = vsub.f32 %v785, %v805
    %v807 = vmax.f32 %v806, 1e-20
    %v808 = vrsqrt.pop %v807
    %v809 = vmul.f32 %v808, %v807
    %v810 = vmul.f32 %v809, %v808
    %v811 = vmul.f32 0.5, %v810
    %v812 = vsub.f32 1.5, %v811
    %v813 = vmul.f32 %v808, %v812
    %vm814 = vweird.f32 %v807
    %vm815 = vweird.f32 %v808
    %vm816 = vmor %vm814, %vm815
    %v817 = vsel %vm816, %v808, %v813
    %v818 = vmul.f32 %v807, %v817
    %v819 = vmul.f32 %v798, %v818
    %v820 = vmul.f32 %v804, %v817
    %v821 = vmul.f32 %v820, %v820
    %v822 = vadd.f32 %v801, %v821
    %v823 = vlog2.pop %v99
    %v824 = vmul.f32 %v823, 0.6931472
    %v825 = vsub.f32 %v824, %v102
    %v826 = vadd.f32 %v825, -3.675754
    %v827 = vmul.f32 %v822, 0.5
    %v828 = vsub.f32 %v826, %v827
    %v829 = vlog2.pop %v819
    %v830 = vmul.f32 %v829, 0.6931472
    %v831 = vsub.f32 %v828, %v830
    %v832 = vmax.f32 %v682, %v831
    %v833 = vsub.f32 %v682, %v832
    %v834 = vmul.f32 %v833, 1.442695
    %v835 = vpow.pop %v834
    %v836 = vmul.f32 %v690, %v835
    %v837 = vsub.f32 %v831, %v832
    %v838 = vmul.f32 %v837, 1.442695
    %v839 = vpow.pop %v838
    %v840 = vadd.f32 %v836, %v839
    %v841 = vlog2.pop %v840
    %v842 = vmul.f32 %v841, 0.6931472
    %v843 = vadd.f32 %v832, %v842
    %844 = vst [vmem:[#allocation10] sm:$0x1] %v843
    // Predicated region
    $region34: #{tpu_custom_call.1} parent=1 // pred_check
      _
    $region35: #{tpu_custom_call.1} parent=1 // pred_check_branch
      %846 = sbr.rel (0) target = $region37
    $region36: #{tpu_custom_call.1} parent=1 // pred_region
      %848 = vsyncadd [#allocation4], 0
      %s850 = sshll.u32 [#allocation10], 4
      %s851 = int_to_ptr.vmem [resolvable:$true] %s850
      %s852 = sshll.u32 %s4, 4
      %s853 = int_to_ptr.hbm [resolvable:$true] %s852
      %855 = dma.vmem_to_hbm [thread:$0]  %s851, 16, %s853, [#allocation4]
    $region37: #{tpu_custom_call.1} parent=1 // pred_fallthru
      _
    // Predicated region
    $region38: #{tpu_custom_call.1} parent=1 // pred_check
      _
    $region39: #{tpu_custom_call.1} parent=1 // pred_check_branch
      %857 = sbr.rel (0) target = $region41
    $region40: #{tpu_custom_call.1} parent=1 // pred_region
      %859 = dma.done [#allocation4], 16
    $region41: #{tpu_custom_call.1} parent=1 // pred_fallthru
      _
    %860 = vsyncpa [#allocation3], 1
    %861 = vsyncpa [#allocation6], 1
    %862 = vsyncpa [#allocation9], 1
    %863 = vsyncpa [#allocation4], 1

</llo_original>
